<compile_context>
chip_gen: v7x
topology: tpu7x:2x2x1
jax: 0.10.0
libtpu: 0.0.40
codegen_flags: <defaults>
</compile_context>

<pallas_src>
import functools

import jax
import jax.numpy as jnp
from jax.experimental import pallas as pl
from jax.experimental.pallas import tpu as pltpu

_SQRT_2_OVER_PI = 0.7978845608028654


def _gelu_tanh(x):
    # tanh-form GELU (EUP); differs from exact-erf nn.GELU() by <=3e-3 pre
    # layer-scale, i.e. <=3e-5 on the block output after gamma=1e-2.
    return 0.5 * x * (1.0 + jnp.tanh(_SQRT_2_OVER_PI * (x + 0.044715 * x * x * x)))


def _convnext_block_kernel(
    xt_ref,      # (1, THp, Wp, 2C) f32  halo'd reflect-padded row tile, packed [real|imag]
    dw_ref,      # (2*kh*kw, 2C) f32     packed depthwise taps ([wdr|wdr] rows, then [wdi|-wdi] rows)
    w1_ref,      # (2C, 2Cm)  bf16       [[w1r, w1i], [-w1i, w1r]]
    w2_ref,      # (2Cm, 2C)  bf16       [[w2r, w2i], [-w2i, w2r]]
    vec_ref,     # (5, 2C) f32           rows: sign, ln_w, ln_b, gamma, b2_eff (all packed to 2C)
    b1_ref,      # (1, 2Cm) f32          packed pwconv1 bias [b1r-b1i | b1r+b1i]
    out_ref,     # (1, TH, W, 2C) f32    packed output tile
    *, TH, W, C, kh, kw, ph, pw, eps,
):
    f32 = jnp.float32
    bf16 = jnp.bfloat16
    C2 = 2 * C
    M = TH * W

    dw = dw_ref[...]

    # ---- depthwise complex conv (reflect padding folded into the tile) ----
    # Hoist the width (dj) shift out of the tap loop: the sublane-unaligned
    # window read happens kw times, not kh*kw times.  Real/imag are packed on
    # the lane axis, so each tap is 2 packed FMAs instead of 4 narrow ones.
    slabs = [xt_ref[0, :, dj:dj + W, :] for dj in range(kw)]   # (THp, W, 2C) each

    acc_a = jnp.zeros((TH, W, C2), f32)   # [ sum xr*wdr | sum xi*wdr ]
    acc_b = jnp.zeros((TH, W, C2), f32)   # [ sum xr*wdi | -sum xi*wdi ]
    for di in range(kh):
        for dj in range(kw):
            tap = di * kw + dj
            win = slabs[dj][di:di + TH]
            acc_a = acc_a + win * dw[tap]
            acc_b = acc_b + win * dw[kh * kw + tap]

    # Residual = centre window of the halo'd tile; reuse the already-read slab.
    res = slabs[pw][ph:ph + TH].reshape(M, C2)

    pa = acc_a.reshape(M, C2)
    pb = acc_b.reshape(M, C2)
    # One half-swap of acc_b (rotary-style lane concat) turns the two packed
    # accumulators into the complex depthwise conv output:
    #   p = [ xr*wdr - xi*wdi | xi*wdr + xr*wdi ]
    p = pa + jnp.concatenate([pb[:, C:], pb[:, :C]], axis=1)

    # ---- complex layer norm over the channel dim (per pixel) ----
    # TODO(synk): wavehax ComplexLayerNorm2d source not available here; this uses
    # per-part mean subtraction, joint complex variance over channels, and a
    # shared real affine (weight/bias) applied to both parts (matches _reference).
    vec = vec_ref[...]
    sgn, lnw, lnb, gamma, b2 = vec[0], vec[1], vec[2], vec[3], vec[4]

    m_sum = jnp.mean(p, axis=1, keepdims=True)          # (mr + mi) / 2
    m_dif = jnp.mean(p * sgn, axis=1, keepdims=True)    # (mr - mi) / 2
    c = p - (m_sum + sgn * m_dif)                       # per-half mean removed
    var = 2.0 * jnp.mean(c * c, axis=1, keepdims=True)  # joint complex variance
    inv = jax.lax.rsqrt(var + eps)
    n = c * inv * lnw + lnb

    # ---- pointwise complex conv 1 (ONE matmul, K=2C) + GELU + conv 2 (ONE matmul) ----
    h = jnp.dot(n.astype(bf16), w1_ref[...], preferred_element_type=f32) + b1_ref[0]
    h = _gelu_tanh(h)
    y = jnp.dot(h.astype(bf16), w2_ref[...], preferred_element_type=f32) + b2

    # ---- layer scale + residual (DropPath is identity at drop_prob=0 / eval) ----
    out_ref[0] = (y * gamma + res).reshape(TH, W, C2)


def _reflect_indices(n, pad):
    idx = jnp.arange(-pad, n + pad)
    idx = jnp.where(idx < 0, -idx, idx)
    idx = jnp.where(idx >= n, 2 * (n - 1) - idx, idx)
    return idx


def _pick_tile_h(H, W, C2, ph, pw, budget_bytes=4 << 20):
    """Largest divisor of H whose halo'd in+out tile stays under the budget."""
    best = 1
    for th in range(1, H + 1):
        if H % th:
            continue
        per_step = 4 * ((th + 2 * ph) * (W + 2 * pw) + th * W) * C2
        if per_step <= budget_bytes:
            best = th
    return best


def _vmem_cap_bytes():
    try:
        cap = getattr(pltpu.get_tpu_info(), "vmem_capacity_bytes", None)
        if cap:
            return int(cap)
    except Exception:
        pass
    return 128 * 2 ** 20


def complex_convnext_block_2d_nhwc(xr, xi, params, *, kernel_size, eps=1e-5, tile_h=None):
    """Forward pass, NHWC in / NHWC out (preferred when stacking blocks)."""
    B, H, W, C = xr.shape
    kh, kw = kernel_size
    ph, pw = kh // 2, kw // 2
    C2 = 2 * C
    Cm = params["w1r"].shape[1]
    Cm2 = 2 * Cm

    if tile_h is None:
        tile_h = _pick_tile_h(H, W, C2, ph, pw)
    assert H % tile_h == 0, "tile_h must divide H"
    TH = tile_h
    nH = H // TH
    THp, Wp = TH + 2 * ph, W + 2 * pw

    f32 = jnp.float32
    bf16 = jnp.bfloat16

    # ---- pack real/imag along channels and build halo'd, reflect-padded row tiles
    # in ONE gather (no separate jnp.pad round trip).
    # TODO(synk): this gather is the remaining wrapper-side HBM materialization;
    # an in-kernel halo DMA behind memory_space=pl.ANY would remove it.
    x = jnp.concatenate([xr, xi], axis=-1).astype(f32)            # (B, H, W, 2C)
    rows = _reflect_indices(H, ph)                                # (H + 2*ph,)
    cols = _reflect_indices(W, pw)                                # (Wp,)
    tile_rows = rows[(jnp.arange(nH) * TH)[:, None] + jnp.arange(THp)[None, :]]
    x_t = x[:, tile_rows]                                         # (B, nH, THp, W, 2C)
    x_t = jnp.take(x_t, cols, axis=3)                             # (B, nH, THp, Wp, 2C)
    x_t = x_t.reshape(B * nH, THp, Wp, C2)

    # ---- parameter packing (plain XLA, once per call) ----
    wdr, wdi = params["wdr"], params["wdi"]                       # (kh*kw, C) each
    dw = jnp.concatenate(
        [jnp.concatenate([wdr, wdr], axis=1),                     # acc_a taps
         jnp.concatenate([wdi, -wdi], axis=1)], axis=0).astype(f32)   # acc_b taps
    w1 = jnp.concatenate(
        [jnp.concatenate([params["w1r"], params["w1i"]], axis=1),
         jnp.concatenate([-params["w1i"], params["w1r"]], axis=1)], axis=0).astype(bf16)
    w2 = jnp.concatenate(
        [jnp.concatenate([params["w2r"], params["w2i"]], axis=1),
         jnp.concatenate([-params["w2i"], params["w2r"]], axis=1)], axis=0).astype(bf16)
    b1 = jnp.concatenate([params["b1r"] - params["b1i"],
                          params["b1r"] + params["b1i"]], axis=1).astype(f32)   # (1, 2Cm)
    sgn = jnp.concatenate([jnp.ones((1, C), f32), -jnp.ones((1, C), f32)], axis=1)
    vec = jnp.concatenate(
        [sgn,
         jnp.concatenate([params["ln_w"], params["ln_w"]], axis=1),
         jnp.concatenate([params["ln_b"], params["ln_b"]], axis=1),
         jnp.concatenate([params["gamma"], params["gamma"]], axis=1),
         jnp.concatenate([params["b2r"] - params["b2i"],
                          params["b2r"] + params["b2i"]], axis=1)], axis=0).astype(f32)

    kernel = functools.partial(
        _convnext_block_kernel,
        TH=TH, W=W, C=C, kh=kh, kw=kw, ph=ph, pw=pw, eps=eps)

    def const_spec(shape):
        return pl.BlockSpec(shape, lambda b, t: (0,) * len(shape))

    in_specs = [
        pl.BlockSpec((1, THp, Wp, C2), lambda b, t: (b * nH + t, 0, 0, 0)),
        const_spec((2 * kh * kw, C2)),
        const_spec((C2, Cm2)),
        const_spec((Cm2, C2)),
        const_spec((5, C2)),
        const_spec((1, Cm2)),
    ]
    out_specs = pl.BlockSpec((1, TH, W, C2), lambda b, t: (b, t, 0, 0))
    out_shape = jax.ShapeDtypeStruct((B, H, W, C2), f32)

    # Generation-aware scoped-VMEM budget: double-buffered block footprint plus
    # temporaries with headroom, capped at 3/4 of VMEM on 64-MiB parts (v7x) and
    # at 64 MiB on 128-MiB parts (v5e/v6e).
    per_step = 4 * (THp * Wp + TH * W) * C2
    tmp = 4 * TH * W * (6 * C2 + 2 * Cm2)
    prm = 4 * (2 * kh * kw + 6) * C2 + 4 * Cm2 + 2 * 2 * C2 * Cm2
    cap = min(64 * 2 ** 20, (_vmem_cap_bytes() * 3) // 4)
    vmem_limit = int(min(max(2 * (2 * per_step + tmp + prm), 16 * 2 ** 20), cap))

    fn = pl.pallas_call(
        kernel,
        grid=(B, nH),
        in_specs=in_specs,
        out_specs=out_specs,
        out_shape=out_shape,
        compiler_params=pltpu.CompilerParams(
            dimension_semantics=("parallel", "parallel"),
            vmem_limit_bytes=vmem_limit),
    )
    y = fn(x_t, dw, w1, w2, vec, b1)
    # Packed lane-dense output -> cheap XLA slice into real/imag.
    return y[..., :C], y[..., C:]


def complex_convnext_block_2d(real_nchw, imag_nchw, params, *, kernel_size,
                              eps=1e-5, tile_h=None):
    """Forward pass with PyTorch-style NCHW inputs/outputs.

    NOTE: when stacking many blocks, call complex_convnext_block_2d_nhwc and
    transpose once per network, not once per block.
    """
    xr = jnp.transpose(real_nchw, (0, 2, 3, 1)).astype(jnp.float32)
    xi = jnp.transpose(imag_nchw, (0, 2, 3, 1)).astype(jnp.float32)
    yr, yi = complex_convnext_block_2d_nhwc(xr, xi, params, kernel_size=kernel_size,
                                            eps=eps, tile_h=tile_h)
    return jnp.transpose(yr, (0, 3, 1, 2)), jnp.transpose(yi, (0, 3, 1, 2))


def _reference(real_nchw, imag_nchw, params, kernel_size, eps=1e-5):
    """Pure-JAX reference (f32, exact-erf GELU) with identical semantics."""
    kh, kw = kernel_size
    ph, pw = kh // 2, kw // 2
    xr = jnp.transpose(real_nchw, (0, 2, 3, 1)).astype(jnp.float32)
    xi = jnp.transpose(imag_nchw, (0, 2, 3, 1)).astype(jnp.float32)
    B, H, W, C = xr.shape
    xrp = jnp.pad(xr, ((0, 0), (ph, ph), (pw, pw), (0, 0)), mode="reflect")
    xip = jnp.pad(xi, ((0, 0), (ph, ph), (pw, pw), (0, 0)), mode="reflect")

    def dwconv(x, w):
        acc = jnp.zeros((B, H, W, C), jnp.float32)
        for dh in range(kh):
            for dw_ in range(kw):
                acc += x[:, dh:dh + H, dw_:dw_ + W, :] * w[dh * kw + dw_]
        return acc

    dr = dwconv(xrp, params["wdr"]) - dwconv(xip, params["wdi"])
    di = dwconv(xip, params["wdr"]) + dwconv(xrp, params["wdi"])
    mr = dr.mean(-1, keepdims=True)
    mi = di.mean(-1, keepdims=True)
    cr, ci = dr - mr, di - mi
    var = (cr * cr + ci * ci).mean(-1, keepdims=True)
    inv = 1.0 / jnp.sqrt(var + eps)
    nr = cr * inv * params["ln_w"][0] + params["ln_b"][0]
    ni = ci * inv * params["ln_w"][0] + params["ln_b"][0]

    dot = functools.partial(jnp.dot, precision=jax.lax.Precision.HIGHEST)

    def pw(a_r, a_i, wr, wi, br, bi):
        rr = dot(a_r, wr) + br[0]
        ir = dot(a_i, wr) + br[0]
        ri = dot(a_r, wi) + bi[0]
        ii = dot(a_i, wi) + bi[0]
        return rr - ii, ir + ri

    hr, hi = pw(nr, ni, params["w1r"], params["w1i"], params["b1r"], params["b1i"])
    hr = jax.nn.gelu(hr, approximate=False)
    hi = jax.nn.gelu(hi, approximate=False)
    yr, yi = pw(hr, hi, params["w2r"], params["w2i"], params["b2r"], params["b2i"])
    g = params["gamma"][0]
    yr = yr * g + xr
    yi = yi * g + xi
    return jnp.transpose(yr, (0, 3, 1, 2)), jnp.transpose(yi, (0, 3, 1, 2))


if __name__ == "__main__":
    B, C, H, W = 2, 4, 16, 16
    mult = 2
    Cm = C * mult
    k = 3                       # depthwise kernel size (odd)
    layer_scale_init_value = 1e-2

    key = jax.random.PRNGKey(0)
    keys = jax.random.split(key, 14)

    def rnd(kk, shape, scale=0.2):
        return (scale * jax.random.normal(kk, shape)).astype(jnp.float32)

    params = {
        "wdr": rnd(keys[0], (k * k, C)),                 # depthwise conv_real weight
        "wdi": rnd(keys[1], (k * k, C)),                 # depthwise conv_imag weight
        "ln_w": (1.0 + rnd(keys[2], (1, C), 0.1)).astype(jnp.float32),
        "ln_b": rnd(keys[3], (1, C), 0.1),
        "w1r": rnd(keys[4], (C, Cm)),
        "w1i": rnd(keys[5], (C, Cm)),
        "b1r": rnd(keys[6], (1, Cm), 0.1),
        "b1i": rnd(keys[7], (1, Cm), 0.1),
        "w2r": rnd(keys[8], (Cm, C)),
        "w2i": rnd(keys[9], (Cm, C)),
        "b2r": rnd(keys[10], (1, C), 0.1),
        "b2i": rnd(keys[11], (1, C), 0.1),
        "gamma": jnp.full((1, C), layer_scale_init_value, jnp.float32),
    }

    real = rnd(keys[12], (B, C, H, W), scale=1.0)
    imag = rnd(keys[13], (B, C, H, W), scale=1.0)

    # tile_h=8 exercises the halo'd row-tiling path (grid = (B=2, nH=2) = 4 steps).
    out_r, out_i = complex_convnext_block_2d(real, imag, params,
                                             kernel_size=(k, k), tile_h=8)
    jax.block_until_ready((out_r, out_i))

    ref_r, ref_i = _reference(real, imag, params, (k, k))
    assert out_r.shape == (B, C, H, W) and out_i.shape == (B, C, H, W)
    # bf16 matmuls + tanh-GELU deviate from the f32/erf reference by <~3e-4
    # after the 1e-2 layer scale; 2e-3 keeps comfortable margin.
    assert jnp.allclose(out_r, ref_r, atol=2e-3, rtol=2e-3)
    assert jnp.allclose(out_i, ref_i, atol=2e-3, rtol=2e-3)
    print("KERNEL_OK")
</pallas_src>

<mosaic_0001>
module attributes {stable_mosaic.version = 11 : i64} {
  func.func @_convnext_block_kernel(%arg0: i32, %arg1: i32, %arg2: memref<1x10x18x8xf32, #tpu.memory_space<vmem>>, %arg3: memref<18x8xf32, #tpu.memory_space<vmem>>, %arg4: memref<8x16xbf16, #tpu.memory_space<vmem>>, %arg5: memref<16x8xbf16, #tpu.memory_space<vmem>>, %arg6: memref<5x8xf32, #tpu.memory_space<vmem>>, %arg7: memref<1x16xf32, #tpu.memory_space<vmem>>, %arg8: memref<1x8x16x8xf32, #tpu.memory_space<vmem>>) attributes {dimension_semantics = [#tpu.dimension_semantics<parallel>, #tpu.dimension_semantics<parallel>], iteration_bounds = array<i64: 2, 2>, scalar_prefetch = 0 : i64, scratch_operands = 0 : i64, tpu.core_type = #tpu.core_type<tc>, window_params = [{transform_indices = @transform_0, window_bounds = array<i64: 1, 10, 18, 8>}, {pipeline_mode = #tpu.pipeline_mode<synchronous>, transform_indices = @transform_1, window_bounds = array<i64: 18, 8>}, {pipeline_mode = #tpu.pipeline_mode<synchronous>, transform_indices = @transform_2, window_bounds = array<i64: 8, 16>}, {pipeline_mode = #tpu.pipeline_mode<synchronous>, transform_indices = @transform_3, window_bounds = array<i64: 16, 8>}, {pipeline_mode = #tpu.pipeline_mode<synchronous>, transform_indices = @transform_4, window_bounds = array<i64: 5, 8>}, {pipeline_mode = #tpu.pipeline_mode<synchronous>, transform_indices = @transform_5, window_bounds = array<i64: 1, 16>}, {transform_indices = @transform_6, window_bounds = array<i64: 1, 8, 16, 8>}]} {
    %c0 = arith.constant 0 : index
    %c0_0 = arith.constant 0 : index
    %0 = vector.load %arg3[%c0, %c0_0] : memref<18x8xf32, #tpu.memory_space<vmem>>, vector<18x8xf32>
    %c0_1 = arith.constant 0 : index
    %c0_2 = arith.constant 0 : index
    %c0_3 = arith.constant 0 : index
    %c0_4 = arith.constant 0 : index
    %1 = vector.load %arg2[%c0_1, %c0_2, %c0_3, %c0_4] : memref<1x10x18x8xf32, #tpu.memory_space<vmem>>, vector<1x10x16x8xf32>
    %2 = vector.shape_cast %1 : vector<1x10x16x8xf32> to vector<10x16x8xf32>
    %c0_5 = arith.constant 0 : index
    %c0_6 = arith.constant 0 : index
    %c1 = arith.constant 1 : index
    %c0_7 = arith.constant 0 : index
    %3 = vector.load %arg2[%c0_5, %c0_6, %c1, %c0_7] : memref<1x10x18x8xf32, #tpu.memory_space<vmem>>, vector<1x10x16x8xf32>
    %4 = vector.shape_cast %3 : vector<1x10x16x8xf32> to vector<10x16x8xf32>
    %c0_8 = arith.constant 0 : index
    %c0_9 = arith.constant 0 : index
    %c2 = arith.constant 2 : index
    %c0_10 = arith.constant 0 : index
    %5 = vector.load %arg2[%c0_8, %c0_9, %c2, %c0_10] : memref<1x10x18x8xf32, #tpu.memory_space<vmem>>, vector<1x10x16x8xf32>
    %6 = vector.shape_cast %5 : vector<1x10x16x8xf32> to vector<10x16x8xf32>
    %cst = arith.constant 0.000000e+00 : f32
    %7 = vector.broadcast %cst : f32 to vector<8x16x8xf32>
    %cst_11 = arith.constant 0.000000e+00 : f32
    %8 = vector.broadcast %cst_11 : f32 to vector<8x16x8xf32>
    %9 = vector.extract_strided_slice %2 {offsets = [0, 0, 0], sizes = [8, 16, 8], strides = [1, 1, 1]} : vector<10x16x8xf32> to vector<8x16x8xf32>
    %10 = vector.extract_strided_slice %0 {offsets = [0, 0], sizes = [1, 8], strides = [1, 1]} : vector<18x8xf32> to vector<1x8xf32>
    %11 = vector.shape_cast %10 : vector<1x8xf32> to vector<8xf32>
    %12 = vector.shape_cast %11 : vector<8xf32> to vector<1x1x8xf32>
    %13 = vector.broadcast %12 : vector<1x1x8xf32> to vector<8x16x8xf32>
    %14 = arith.mulf %9, %13 : vector<8x16x8xf32>
    %15 = arith.addf %7, %14 : vector<8x16x8xf32>
    %16 = vector.extract_strided_slice %0 {offsets = [9, 0], sizes = [1, 8], strides = [1, 1]} : vector<18x8xf32> to vector<1x8xf32>
    %17 = vector.shape_cast %16 : vector<1x8xf32> to vector<8xf32>
    %18 = vector.shape_cast %17 : vector<8xf32> to vector<1x1x8xf32>
    %19 = vector.broadcast %18 : vector<1x1x8xf32> to vector<8x16x8xf32>
    %20 = arith.mulf %9, %19 : vector<8x16x8xf32>
    %21 = arith.addf %8, %20 : vector<8x16x8xf32>
    %22 = vector.extract_strided_slice %4 {offsets = [0, 0, 0], sizes = [8, 16, 8], strides = [1, 1, 1]} : vector<10x16x8xf32> to vector<8x16x8xf32>
    %23 = vector.extract_strided_slice %0 {offsets = [1, 0], sizes = [1, 8], strides = [1, 1]} : vector<18x8xf32> to vector<1x8xf32>
    %24 = vector.shape_cast %23 : vector<1x8xf32> to vector<8xf32>
    %25 = vector.shape_cast %24 : vector<8xf32> to vector<1x1x8xf32>
    %26 = vector.broadcast %25 : vector<1x1x8xf32> to vector<8x16x8xf32>
    %27 = arith.mulf %22, %26 : vector<8x16x8xf32>
    %28 = arith.addf %15, %27 : vector<8x16x8xf32>
    %29 = vector.extract_strided_slice %0 {offsets = [10, 0], sizes = [1, 8], strides = [1, 1]} : vector<18x8xf32> to vector<1x8xf32>
    %30 = vector.shape_cast %29 : vector<1x8xf32> to vector<8xf32>
    %31 = vector.shape_cast %30 : vector<8xf32> to vector<1x1x8xf32>
    %32 = vector.broadcast %31 : vector<1x1x8xf32> to vector<8x16x8xf32>
    %33 = arith.mulf %22, %32 : vector<8x16x8xf32>
    %34 = arith.addf %21, %33 : vector<8x16x8xf32>
    %35 = vector.extract_strided_slice %6 {offsets = [0, 0, 0], sizes = [8, 16, 8], strides = [1, 1, 1]} : vector<10x16x8xf32> to vector<8x16x8xf32>
    %36 = vector.extract_strided_slice %0 {offsets = [2, 0], sizes = [1, 8], strides = [1, 1]} : vector<18x8xf32> to vector<1x8xf32>
    %37 = vector.shape_cast %36 : vector<1x8xf32> to vector<8xf32>
    %38 = vector.shape_cast %37 : vector<8xf32> to vector<1x1x8xf32>
    %39 = vector.broadcast %38 : vector<1x1x8xf32> to vector<8x16x8xf32>
    %40 = arith.mulf %35, %39 : vector<8x16x8xf32>
    %41 = arith.addf %28, %40 : vector<8x16x8xf32>
    %42 = vector.extract_strided_slice %0 {offsets = [11, 0], sizes = [1, 8], strides = [1, 1]} : vector<18x8xf32> to vector<1x8xf32>
    %43 = vector.shape_cast %42 : vector<1x8xf32> to vector<8xf32>
    %44 = vector.shape_cast %43 : vector<8xf32> to vector<1x1x8xf32>
    %45 = vector.broadcast %44 : vector<1x1x8xf32> to vector<8x16x8xf32>
    %46 = arith.mulf %35, %45 : vector<8x16x8xf32>
    %47 = arith.addf %34, %46 : vector<8x16x8xf32>
    %48 = vector.extract_strided_slice %2 {offsets = [1, 0, 0], sizes = [8, 16, 8], strides = [1, 1, 1]} : vector<10x16x8xf32> to vector<8x16x8xf32>
    %49 = vector.extract_strided_slice %0 {offsets = [3, 0], sizes = [1, 8], strides = [1, 1]} : vector<18x8xf32> to vector<1x8xf32>
    %50 = vector.shape_cast %49 : vector<1x8xf32> to vector<8xf32>
    %51 = vector.shape_cast %50 : vector<8xf32> to vector<1x1x8xf32>
    %52 = vector.broadcast %51 : vector<1x1x8xf32> to vector<8x16x8xf32>
    %53 = arith.mulf %48, %52 : vector<8x16x8xf32>
    %54 = arith.addf %41, %53 : vector<8x16x8xf32>
    %55 = vector.extract_strided_slice %0 {offsets = [12, 0], sizes = [1, 8], strides = [1, 1]} : vector<18x8xf32> to vector<1x8xf32>
    %56 = vector.shape_cast %55 : vector<1x8xf32> to vector<8xf32>
    %57 = vector.shape_cast %56 : vector<8xf32> to vector<1x1x8xf32>
    %58 = vector.broadcast %57 : vector<1x1x8xf32> to vector<8x16x8xf32>
    %59 = arith.mulf %48, %58 : vector<8x16x8xf32>
    %60 = arith.addf %47, %59 : vector<8x16x8xf32>
    %61 = vector.extract_strided_slice %4 {offsets = [1, 0, 0], sizes = [8, 16, 8], strides = [1, 1, 1]} : vector<10x16x8xf32> to vector<8x16x8xf32>
    %62 = vector.extract_strided_slice %0 {offsets = [4, 0], sizes = [1, 8], strides = [1, 1]} : vector<18x8xf32> to vector<1x8xf32>
    %63 = vector.shape_cast %62 : vector<1x8xf32> to vector<8xf32>
    %64 = vector.shape_cast %63 : vector<8xf32> to vector<1x1x8xf32>
    %65 = vector.broadcast %64 : vector<1x1x8xf32> to vector<8x16x8xf32>
    %66 = arith.mulf %61, %65 : vector<8x16x8xf32>
    %67 = arith.addf %54, %66 : vector<8x16x8xf32>
    %68 = vector.extract_strided_slice %0 {offsets = [13, 0], sizes = [1, 8], strides = [1, 1]} : vector<18x8xf32> to vector<1x8xf32>
    %69 = vector.shape_cast %68 : vector<1x8xf32> to vector<8xf32>
    %70 = vector.shape_cast %69 : vector<8xf32> to vector<1x1x8xf32>
    %71 = vector.broadcast %70 : vector<1x1x8xf32> to vector<8x16x8xf32>
    %72 = arith.mulf %61, %71 : vector<8x16x8xf32>
    %73 = arith.addf %60, %72 : vector<8x16x8xf32>
    %74 = vector.extract_strided_slice %6 {offsets = [1, 0, 0], sizes = [8, 16, 8], strides = [1, 1, 1]} : vector<10x16x8xf32> to vector<8x16x8xf32>
    %75 = vector.extract_strided_slice %0 {offsets = [5, 0], sizes = [1, 8], strides = [1, 1]} : vector<18x8xf32> to vector<1x8xf32>
    %76 = vector.shape_cast %75 : vector<1x8xf32> to vector<8xf32>
    %77 = vector.shape_cast %76 : vector<8xf32> to vector<1x1x8xf32>
    %78 = vector.broadcast %77 : vector<1x1x8xf32> to vector<8x16x8xf32>
    %79 = arith.mulf %74, %78 : vector<8x16x8xf32>
    %80 = arith.addf %67, %79 : vector<8x16x8xf32>
    %81 = vector.extract_strided_slice %0 {offsets = [14, 0], sizes = [1, 8], strides = [1, 1]} : vector<18x8xf32> to vector<1x8xf32>
    %82 = vector.shape_cast %81 : vector<1x8xf32> to vector<8xf32>
    %83 = vector.shape_cast %82 : vector<8xf32> to vector<1x1x8xf32>
    %84 = vector.broadcast %83 : vector<1x1x8xf32> to vector<8x16x8xf32>
    %85 = arith.mulf %74, %84 : vector<8x16x8xf32>
    %86 = arith.addf %73, %85 : vector<8x16x8xf32>
    %87 = vector.extract_strided_slice %2 {offsets = [2, 0, 0], sizes = [8, 16, 8], strides = [1, 1, 1]} : vector<10x16x8xf32> to vector<8x16x8xf32>
    %88 = vector.extract_strided_slice %0 {offsets = [6, 0], sizes = [1, 8], strides = [1, 1]} : vector<18x8xf32> to vector<1x8xf32>
    %89 = vector.shape_cast %88 : vector<1x8xf32> to vector<8xf32>
    %90 = vector.shape_cast %89 : vector<8xf32> to vector<1x1x8xf32>
    %91 = vector.broadcast %90 : vector<1x1x8xf32> to vector<8x16x8xf32>
    %92 = arith.mulf %87, %91 : vector<8x16x8xf32>
    %93 = arith.addf %80, %92 : vector<8x16x8xf32>
    %94 = vector.extract_strided_slice %0 {offsets = [15, 0], sizes = [1, 8], strides = [1, 1]} : vector<18x8xf32> to vector<1x8xf32>
    %95 = vector.shape_cast %94 : vector<1x8xf32> to vector<8xf32>
    %96 = vector.shape_cast %95 : vector<8xf32> to vector<1x1x8xf32>
    %97 = vector.broadcast %96 : vector<1x1x8xf32> to vector<8x16x8xf32>
    %98 = arith.mulf %87, %97 : vector<8x16x8xf32>
    %99 = arith.addf %86, %98 : vector<8x16x8xf32>
    %100 = vector.extract_strided_slice %4 {offsets = [2, 0, 0], sizes = [8, 16, 8], strides = [1, 1, 1]} : vector<10x16x8xf32> to vector<8x16x8xf32>
    %101 = vector.extract_strided_slice %0 {offsets = [7, 0], sizes = [1, 8], strides = [1, 1]} : vector<18x8xf32> to vector<1x8xf32>
    %102 = vector.shape_cast %101 : vector<1x8xf32> to vector<8xf32>
    %103 = vector.shape_cast %102 : vector<8xf32> to vector<1x1x8xf32>
    %104 = vector.broadcast %103 : vector<1x1x8xf32> to vector<8x16x8xf32>
    %105 = arith.mulf %100, %104 : vector<8x16x8xf32>
    %106 = arith.addf %93, %105 : vector<8x16x8xf32>
    %107 = vector.extract_strided_slice %0 {offsets = [16, 0], sizes = [1, 8], strides = [1, 1]} : vector<18x8xf32> to vector<1x8xf32>
    %108 = vector.shape_cast %107 : vector<1x8xf32> to vector<8xf32>
    %109 = vector.shape_cast %108 : vector<8xf32> to vector<1x1x8xf32>
    %110 = vector.broadcast %109 : vector<1x1x8xf32> to vector<8x16x8xf32>
    %111 = arith.mulf %100, %110 : vector<8x16x8xf32>
    %112 = arith.addf %99, %111 : vector<8x16x8xf32>
    %113 = vector.extract_strided_slice %6 {offsets = [2, 0, 0], sizes = [8, 16, 8], strides = [1, 1, 1]} : vector<10x16x8xf32> to vector<8x16x8xf32>
    %114 = vector.extract_strided_slice %0 {offsets = [8, 0], sizes = [1, 8], strides = [1, 1]} : vector<18x8xf32> to vector<1x8xf32>
    %115 = vector.shape_cast %114 : vector<1x8xf32> to vector<8xf32>
    %116 = vector.shape_cast %115 : vector<8xf32> to vector<1x1x8xf32>
    %117 = vector.broadcast %116 : vector<1x1x8xf32> to vector<8x16x8xf32>
    %118 = arith.mulf %113, %117 : vector<8x16x8xf32>
    %119 = arith.addf %106, %118 : vector<8x16x8xf32>
    %120 = vector.extract_strided_slice %0 {offsets = [17, 0], sizes = [1, 8], strides = [1, 1]} : vector<18x8xf32> to vector<1x8xf32>
    %121 = vector.shape_cast %120 : vector<1x8xf32> to vector<8xf32>
    %122 = vector.shape_cast %121 : vector<8xf32> to vector<1x1x8xf32>
    %123 = vector.broadcast %122 : vector<1x1x8xf32> to vector<8x16x8xf32>
    %124 = arith.mulf %113, %123 : vector<8x16x8xf32>
    %125 = arith.addf %112, %124 : vector<8x16x8xf32>
    %126 = vector.extract_strided_slice %4 {offsets = [1, 0, 0], sizes = [8, 16, 8], strides = [1, 1, 1]} : vector<10x16x8xf32> to vector<8x16x8xf32>
    %127 = vector.shape_cast %126 : vector<8x16x8xf32> to vector<128x8xf32>
    %128 = vector.shape_cast %119 : vector<8x16x8xf32> to vector<128x8xf32>
    %129 = vector.shape_cast %125 : vector<8x16x8xf32> to vector<128x8xf32>
    %130 = vector.extract_strided_slice %129 {offsets = [0, 4], sizes = [128, 4], strides = [1, 1]} : vector<128x8xf32> to vector<128x4xf32>
    %131 = vector.extract_strided_slice %129 {offsets = [0, 0], sizes = [128, 4], strides = [1, 1]} : vector<128x8xf32> to vector<128x4xf32>
    %132 = tpu.concatenate %130, %131 in 1 : vector<128x4xf32>, vector<128x4xf32> -> vector<128x8xf32>
    %133 = arith.addf %128, %132 : vector<128x8xf32>
    %c0_12 = arith.constant 0 : index
    %c0_13 = arith.constant 0 : index
    %134 = vector.load %arg6[%c0_12, %c0_13] : memref<5x8xf32, #tpu.memory_space<vmem>>, vector<5x8xf32>
    %135 = vector.extract_strided_slice %134 {offsets = [0, 0], sizes = [1, 8], strides = [1, 1]} : vector<5x8xf32> to vector<1x8xf32>
    %136 = vector.shape_cast %135 : vector<1x8xf32> to vector<8xf32>
    %137 = vector.extract_strided_slice %134 {offsets = [1, 0], sizes = [1, 8], strides = [1, 1]} : vector<5x8xf32> to vector<1x8xf32>
    %138 = vector.shape_cast %137 : vector<1x8xf32> to vector<8xf32>
    %139 = vector.extract_strided_slice %134 {offsets = [2, 0], sizes = [1, 8], strides = [1, 1]} : vector<5x8xf32> to vector<1x8xf32>
    %140 = vector.shape_cast %139 : vector<1x8xf32> to vector<8xf32>
    %141 = vector.extract_strided_slice %134 {offsets = [3, 0], sizes = [1, 8], strides = [1, 1]} : vector<5x8xf32> to vector<1x8xf32>
    %142 = vector.shape_cast %141 : vector<1x8xf32> to vector<8xf32>
    %143 = vector.extract_strided_slice %134 {offsets = [4, 0], sizes = [1, 8], strides = [1, 1]} : vector<5x8xf32> to vector<1x8xf32>
    %144 = vector.shape_cast %143 : vector<1x8xf32> to vector<8xf32>
    %cst_14 = arith.constant dense<0.000000e+00> : vector<128xf32>
    %145 = vector.multi_reduction <add>, %133, %cst_14 [1] : vector<128x8xf32> to vector<128xf32>
    %146 = vector.shape_cast %145 : vector<128xf32> to vector<128x1xf32>
    %cst_15 = arith.constant 8.000000e+00 : f32
    %147 = vector.broadcast %cst_15 : f32 to vector<128x1xf32>
    %148 = arith.divf %146, %147 : vector<128x1xf32>
    %149 = vector.shape_cast %136 : vector<8xf32> to vector<1x8xf32>
    %150 = vector.broadcast %149 : vector<1x8xf32> to vector<128x8xf32>
    %151 = arith.mulf %133, %150 : vector<128x8xf32>
    %cst_16 = arith.constant dense<0.000000e+00> : vector<128xf32>
    %152 = vector.multi_reduction <add>, %151, %cst_16 [1] : vector<128x8xf32> to vector<128xf32>
    %153 = vector.shape_cast %152 : vector<128xf32> to vector<128x1xf32>
    %cst_17 = arith.constant 8.000000e+00 : f32
    %154 = vector.broadcast %cst_17 : f32 to vector<128x1xf32>
    %155 = arith.divf %153, %154 : vector<128x1xf32>
    %156 = vector.shape_cast %136 : vector<8xf32> to vector<1x8xf32>
    %157 = vector.broadcast %156 : vector<1x8xf32> to vector<128x8xf32>
    %158 = vector.broadcast %155 : vector<128x1xf32> to vector<128x8xf32>
    %159 = arith.mulf %157, %158 : vector<128x8xf32>
    %160 = vector.broadcast %148 : vector<128x1xf32> to vector<128x8xf32>
    %161 = arith.addf %160, %159 : vector<128x8xf32>
    %162 = arith.subf %133, %161 : vector<128x8xf32>
    %163 = arith.mulf %162, %162 : vector<128x8xf32>
    %cst_18 = arith.constant dense<0.000000e+00> : vector<128xf32>
    %164 = vector.multi_reduction <add>, %163, %cst_18 [1] : vector<128x8xf32> to vector<128xf32>
    %165 = vector.shape_cast %164 : vector<128xf32> to vector<128x1xf32>
    %cst_19 = arith.constant 8.000000e+00 : f32
    %166 = vector.broadcast %cst_19 : f32 to vector<128x1xf32>
    %167 = arith.divf %165, %166 : vector<128x1xf32>
    %cst_20 = arith.constant 2.000000e+00 : f32
    %168 = vector.broadcast %cst_20 : f32 to vector<128x1xf32>
    %169 = arith.mulf %168, %167 : vector<128x1xf32>
    %cst_21 = arith.constant 9.99999974E-6 : f32
    %170 = vector.broadcast %cst_21 : f32 to vector<128x1xf32>
    %171 = arith.addf %169, %170 : vector<128x1xf32>
    %172 = math.rsqrt %171 : vector<128x1xf32>
    %173 = vector.broadcast %172 : vector<128x1xf32> to vector<128x8xf32>
    %174 = arith.mulf %162, %173 : vector<128x8xf32>
    %175 = vector.shape_cast %138 : vector<8xf32> to vector<1x8xf32>
    %176 = vector.broadcast %175 : vector<1x8xf32> to vector<128x8xf32>
    %177 = arith.mulf %174, %176 : vector<128x8xf32>
    %178 = vector.shape_cast %140 : vector<8xf32> to vector<1x8xf32>
    %179 = vector.broadcast %178 : vector<1x8xf32> to vector<128x8xf32>
    %180 = arith.addf %177, %179 : vector<128x8xf32>
    %181 = arith.truncf %180 : vector<128x8xf32> to vector<128x8xbf16>
    %c0_22 = arith.constant 0 : index
    %c0_23 = arith.constant 0 : index
    %182 = vector.load %arg4[%c0_22, %c0_23] : memref<8x16xbf16, #tpu.memory_space<vmem>>, vector<8x16xbf16>
    %cst_24 = arith.constant dense<0.000000e+00> : vector<128x16xf32>
    %183 = tpu.matmul %181, %182, %cst_24 {dimension_numbers = #tpu.dot_dimension_numbers<[1], [0], [0], [1], [0, 0, 1, 1], [], []>} : vector<128x8xbf16>, vector<8x16xbf16>, vector<128x16xf32> -> vector<128x16xf32>
    %c0_25 = arith.constant 0 : index
    %c0_26 = arith.constant 0 : index
    %184 = vector.load %arg7[%c0_25, %c0_26] : memref<1x16xf32, #tpu.memory_space<vmem>>, vector<1x16xf32>
    %185 = vector.shape_cast %184 : vector<1x16xf32> to vector<16xf32>
    %186 = vector.shape_cast %185 : vector<16xf32> to vector<1x16xf32>
    %187 = vector.broadcast %186 : vector<1x16xf32> to vector<128x16xf32>
    %188 = arith.addf %183, %187 : vector<128x16xf32>
    %cst_27 = arith.constant 5.000000e-01 : f32
    %189 = vector.broadcast %cst_27 : f32 to vector<128x16xf32>
    %190 = arith.mulf %189, %188 : vector<128x16xf32>
    %cst_28 = arith.constant 4.471500e-02 : f32
    %191 = vector.broadcast %cst_28 : f32 to vector<128x16xf32>
    %192 = arith.mulf %191, %188 : vector<128x16xf32>
    %193 = arith.mulf %192, %188 : vector<128x16xf32>
    %194 = arith.mulf %193, %188 : vector<128x16xf32>
    %195 = arith.addf %188, %194 : vector<128x16xf32>
    %cst_29 = arith.constant 0.797884583 : f32
    %196 = vector.broadcast %cst_29 : f32 to vector<128x16xf32>
    %197 = arith.mulf %196, %195 : vector<128x16xf32>
    %198 = math.tanh %197 : vector<128x16xf32>
    %cst_30 = arith.constant 1.000000e+00 : f32
    %199 = vector.broadcast %cst_30 : f32 to vector<128x16xf32>
    %200 = arith.addf %199, %198 : vector<128x16xf32>
    %201 = arith.mulf %190, %200 : vector<128x16xf32>
    %202 = arith.truncf %201 : vector<128x16xf32> to vector<128x16xbf16>
    %c0_31 = arith.constant 0 : index
    %c0_32 = arith.constant 0 : index
    %203 = vector.load %arg5[%c0_31, %c0_32] : memref<16x8xbf16, #tpu.memory_space<vmem>>, vector<16x8xbf16>
    %cst_33 = arith.constant dense<0.000000e+00> : vector<128x8xf32>
    %204 = tpu.matmul %202, %203, %cst_33 {dimension_numbers = #tpu.dot_dimension_numbers<[1], [0], [0], [1], [0, 0, 1, 1], [], []>} : vector<128x16xbf16>, vector<16x8xbf16>, vector<128x8xf32> -> vector<128x8xf32>
    %205 = vector.shape_cast %144 : vector<8xf32> to vector<1x8xf32>
    %206 = vector.broadcast %205 : vector<1x8xf32> to vector<128x8xf32>
    %207 = arith.addf %204, %206 : vector<128x8xf32>
    %208 = vector.shape_cast %142 : vector<8xf32> to vector<1x8xf32>
    %209 = vector.broadcast %208 : vector<1x8xf32> to vector<128x8xf32>
    %210 = arith.mulf %207, %209 : vector<128x8xf32>
    %211 = arith.addf %210, %127 : vector<128x8xf32>
    %212 = vector.shape_cast %211 : vector<128x8xf32> to vector<8x16x8xf32>
    %c0_34 = arith.constant 0 : index
    %c0_35 = arith.constant 0 : index
    %c0_36 = arith.constant 0 : index
    %c0_37 = arith.constant 0 : index
    %213 = vector.load %arg8[%c0_34, %c0_35, %c0_36, %c0_37] : memref<1x8x16x8xf32, #tpu.memory_space<vmem>>, vector<1x8x16x8xf32>
    %214 = vector.shape_cast %213 : vector<1x8x16x8xf32> to vector<8x16x8xf32>
    %215 = vector.shape_cast %212 : vector<8x16x8xf32> to vector<1x8x16x8xf32>
    tpu.vector_store %arg8[%c0_34, %c0_35, %c0_36, %c0_37], %215 {strides = array<i32>} : memref<1x8x16x8xf32, #tpu.memory_space<vmem>>, vector<1x8x16x8xf32>,
    return
  }
  func.func @transform_0(%arg0: i32, %arg1: i32) -> (i32, i32, i32, i32) {
    %c2_i32 = arith.constant 2 : i32
    %0 = arith.muli %arg0, %c2_i32 : i32
    %1 = arith.addi %0, %arg1 : i32
    %c0_i32 = arith.constant 0 : i32
    %c0_i32_0 = arith.constant 0 : i32
    %c0_i32_1 = arith.constant 0 : i32
    %c0_i32_2 = arith.constant 0 : i32
    return %1, %c0_i32, %c0_i32_0, %c0_i32_1 : i32, i32, i32, i32
  }
  func.func @transform_1(%arg0: i32, %arg1: i32) -> (i32, i32) {
    %c0_i32 = arith.constant 0 : i32
    %c0_i32_0 = arith.constant 0 : i32
    %c0_i32_1 = arith.constant 0 : i32
    return %c0_i32, %c0_i32_0 : i32, i32
  }
  func.func @transform_2(%arg0: i32, %arg1: i32) -> (i32, i32) {
    %c0_i32 = arith.constant 0 : i32
    %c0_i32_0 = arith.constant 0 : i32
    %c0_i32_1 = arith.constant 0 : i32
    return %c0_i32, %c0_i32_0 : i32, i32
  }
  func.func @transform_3(%arg0: i32, %arg1: i32) -> (i32, i32) {
    %c0_i32 = arith.constant 0 : i32
    %c0_i32_0 = arith.constant 0 : i32
    %c0_i32_1 = arith.constant 0 : i32
    return %c0_i32, %c0_i32_0 : i32, i32
  }
  func.func @transform_4(%arg0: i32, %arg1: i32) -> (i32, i32) {
    %c0_i32 = arith.constant 0 : i32
    %c0_i32_0 = arith.constant 0 : i32
    %c0_i32_1 = arith.constant 0 : i32
    return %c0_i32, %c0_i32_0 : i32, i32
  }
  func.func @transform_5(%arg0: i32, %arg1: i32) -> (i32, i32) {
    %c0_i32 = arith.constant 0 : i32
    %c0_i32_0 = arith.constant 0 : i32
    %c0_i32_1 = arith.constant 0 : i32
    return %c0_i32, %c0_i32_0 : i32, i32
  }
  func.func @transform_6(%arg0: i32, %arg1: i32) -> (i32, i32, i32, i32) {
    %c0_i32 = arith.constant 0 : i32
    %c0_i32_0 = arith.constant 0 : i32
    %c0_i32_1 = arith.constant 0 : i32
    return %arg0, %arg1, %c0_i32, %c0_i32_0 : i32, i32, i32, i32
  }
}

</mosaic_0001>

<llo_original>
// kernel: tpu_custom_call.1
$region0: #{tpu_custom_call.1}
  #allocation0 [shape = 'u32[]', space=smem, size = 0x4, offset = 0x4, fixed_abs, tag = 'smem constant byte address 0x4 - core index']
  #allocation1 [shape = 'u32[144,128]{1,0:T(1,128)}', space=vmem, size = 0x12000, scoped, tag = 'internal scratch']
  %s0 = inlined_call_operand.vmem [shape: f32[4,10,18,8], index: 0, kind: input, shape index: {}]
  %s1 = inlined_call_operand.vmem [shape: f32[18,8], index: 1, kind: input, shape index: {}]
  %s2 = inlined_call_operand.vmem [shape: bf16[8,16], index: 2, kind: input, shape index: {}]
  %s3 = inlined_call_operand.vmem [shape: bf16[16,8], index: 3, kind: input, shape index: {}]
  %s4 = inlined_call_operand.vmem [shape: f32[5,8], index: 4, kind: input, shape index: {}]
  %s5 = inlined_call_operand.vmem [shape: f32[1,16], index: 5, kind: input, shape index: {}]
  %s6 = inlined_call_operand.vmem [shape: f32[2,16,16,8], index: 6, kind: output, shape index: {}]
  %s7 = sld [smem:[#allocation0]]
  $region57: #{tpu_custom_call.1} parent=0
    _
  %s9 = ssub.s32 1, %s7
  %s10 = scalar_select 0, %s9, %s7
  loop: start=0, step=1, limit=6
  $region2: #{tpu_custom_call.1} parent=0 // loop_pre_header
    _
  $region3: #{tpu_custom_call.1} parent=0 // loop_header
    %s12 = sphi 0, %s16
    %p13 = scmp.ge.s32.totalorder %s12, 6
    %s19 = sphi 0, %s31
    %s20 = sphi 0, %s27
    %s21 = sphi 0, %s19
    %s22 = sphi 0, %s20
    %s23 = sphi 0, %s21
    %s24 = sphi 0, %s22
    %s38 = sphi 0, %s40
    %s41 = sphi 0, %s38
    %s42 = sphi 0, %s41
    %s58 = sphi 0, %s42
    %s62 = sphi 0, %s62
    %s64 = sphi 0, %s62
    %s65 = sphi 0, %s64
    %s79 = sphi 0, %s65
    %s83 = sphi 0, %s83
    %s85 = sphi 0, %s83
    %s86 = sphi 0, %s85
    %s100 = sphi 0, %s86
    %s104 = sphi 0, %s104
    %s106 = sphi 0, %s104
    %s107 = sphi 0, %s106
    %s121 = sphi 0, %s107
    %s125 = sphi 0, %s125
    %s127 = sphi 0, %s125
    %s128 = sphi 0, %s127
    %s142 = sphi 0, %s128
    %s146 = sphi 0, %s146
    %s148 = sphi 0, %s146
    %s149 = sphi 0, %s148
    %s163 = sphi 0, %s149
    %s171 = sphi 0, %s173
    %s174 = sphi 0, %s171
    %s175 = sphi 0, %s174
    %s191 = sphi 0, %s175
  $region4: #{tpu_custom_call.1} parent=0 // loop_header_branch
    %15 = sbr.rel (%p13) target = $region8
  $region5: #{tpu_custom_call.1} parent=0 // loop_body
    %s17 = ssub.s32 %s12, 1
    %s18 = ssub.s32 %s12, 2
    %s25 = sadd.s32 1, %s20
    %p26 = scmp.ge.s32.totalorder %s25, 2
    %s27 = scalar_select %p26, 0, %s25
    %s28 = sadd.s32 1, %s19
    %s29 = scalar_select %p26, %s28, %s19
    %p30 = scmp.ge.s32.totalorder %s29, 2
    %s31 = scalar_select %p30, 0, %s29
    %s32 = smul.u32 %s19, 2
    %s33 = sadd.s32 %s32, %s20
    %s34 = smul.u32 %s31, 2
    %s35 = sadd.s32 %s34, %s27
    %s36 = ssub.s32 %s33, %s35
    %p37 = scmp.eq.s32.totalorder %s36, 0
    %s39 = sadd.s32 %s38, 1
    %s40 = scalar_select %p37, %s38, %s39
    %p43 = pneg %p37
    %p44 = scmp.eq.s32.totalorder %s12, 3
    %p45 = por %p43, %p44
    %p46 = scmp.ne.s32.totalorder %s38, %s41
    %p47 = scmp.eq.s32.totalorder %s12, 0
    %p48 = por %p46, %p47
    %p49 = scmp.ne.s32.totalorder %s38, %s41
    %p50 = scmp.eq.s32.totalorder %s17, 3
    %p51 = por %p49, %p50
    %p52 = scmp.ne.s32.totalorder %s41, %s42
    %p53 = scmp.eq.s32.totalorder %s17, 0
    %p54 = por %p52, %p53
    %p55 = scmp.ne.s32.totalorder %s41, %s42
    %p56 = scmp.eq.s32.totalorder %s18, 3
    %p57 = por %p55, %p56
    %p59 = scmp.ne.s32.totalorder %s42, %s58
    %p60 = scmp.eq.s32.totalorder %s18, 0
    %p61 = por %p59, %p60
    %s63 = sadd.s32 %s62, 1
    %p66 = scmp.eq.s32.totalorder %s12, 3
    %p67 = scmp.ne.s32.totalorder %s62, %s64
    %p68 = scmp.eq.s32.totalorder %s12, 0
    %p69 = por %p67, %p68
    %p70 = scmp.ne.s32.totalorder %s62, %s64
    %p71 = scmp.eq.s32.totalorder %s17, 3
    %p72 = por %p70, %p71
    %p73 = scmp.ne.s32.totalorder %s64, %s65
    %p74 = scmp.eq.s32.totalorder %s17, 0
    %p75 = por %p73, %p74
    %p76 = scmp.ne.s32.totalorder %s64, %s65
    %p77 = scmp.eq.s32.totalorder %s18, 3
    %p78 = por %p76, %p77
    %p80 = scmp.ne.s32.totalorder %s65, %s79
    %p81 = scmp.eq.s32.totalorder %s18, 0
    %p82 = por %p80, %p81
    %s84 = sadd.s32 %s83, 1
    %p87 = scmp.eq.s32.totalorder %s12, 3
    %p88 = scmp.ne.s32.totalorder %s83, %s85
    %p89 = scmp.eq.s32.totalorder %s12, 0
    %p90 = por %p88, %p89
    %p91 = scmp.ne.s32.totalorder %s83, %s85
    %p92 = scmp.eq.s32.totalorder %s17, 3
    %p93 = por %p91, %p92
    %p94 = scmp.ne.s32.totalorder %s85, %s86
    %p95 = scmp.eq.s32.totalorder %s17, 0
    %p96 = por %p94, %p95
    %p97 = scmp.ne.s32.totalorder %s85, %s86
    %p98 = scmp.eq.s32.totalorder %s18, 3
    %p99 = por %p97, %p98
    %p101 = scmp.ne.s32.totalorder %s86, %s100
    %p102 = scmp.eq.s32.totalorder %s18, 0
    %p103 = por %p101, %p102
    %s105 = sadd.s32 %s104, 1
    %p108 = scmp.eq.s32.totalorder %s12, 3
    %p109 = scmp.ne.s32.totalorder %s104, %s106
    %p110 = scmp.eq.s32.totalorder %s12, 0
    %p111 = por %p109, %p110
    %p112 = scmp.ne.s32.totalorder %s104, %s106
    %p113 = scmp.eq.s32.totalorder %s17, 3
    %p114 = por %p112, %p113
    %p115 = scmp.ne.s32.totalorder %s106, %s107
    %p116 = scmp.eq.s32.totalorder %s17, 0
    %p117 = por %p115, %p116
    %p118 = scmp.ne.s32.totalorder %s106, %s107
    %p119 = scmp.eq.s32.totalorder %s18, 3
    %p120 = por %p118, %p119
    %p122 = scmp.ne.s32.totalorder %s107, %s121
    %p123 = scmp.eq.s32.totalorder %s18, 0
    %p124 = por %p122, %p123
    %s126 = sadd.s32 %s125, 1
    %p129 = scmp.eq.s32.totalorder %s12, 3
    %p130 = scmp.ne.s32.totalorder %s125, %s127
    %p131 = scmp.eq.s32.totalorder %s12, 0
    %p132 = por %p130, %p131
    %p133 = scmp.ne.s32.totalorder %s125, %s127
    %p134 = scmp.eq.s32.totalorder %s17, 3
    %p135 = por %p133, %p134
    %p136 = scmp.ne.s32.totalorder %s127, %s128
    %p137 = scmp.eq.s32.totalorder %s17, 0
    %p138 = por %p136, %p137
    %p139 = scmp.ne.s32.totalorder %s127, %s128
    %p140 = scmp.eq.s32.totalorder %s18, 3
    %p141 = por %p139, %p140
    %p143 = scmp.ne.s32.totalorder %s128, %s142
    %p144 = scmp.eq.s32.totalorder %s18, 0
    %p145 = por %p143, %p144
    %s147 = sadd.s32 %s146, 1
    %p150 = scmp.eq.s32.totalorder %s12, 3
    %p151 = scmp.ne.s32.totalorder %s146, %s148
    %p152 = scmp.eq.s32.totalorder %s12, 0
    %p153 = por %p151, %p152
    %p154 = scmp.ne.s32.totalorder %s146, %s148
    %p155 = scmp.eq.s32.totalorder %s17, 3
    %p156 = por %p154, %p155
    %p157 = scmp.ne.s32.totalorder %s148, %s149
    %p158 = scmp.eq.s32.totalorder %s17, 0
    %p159 = por %p157, %p158
    %p160 = scmp.ne.s32.totalorder %s148, %s149
    %p161 = scmp.eq.s32.totalorder %s18, 3
    %p162 = por %p160, %p161
    %p164 = scmp.ne.s32.totalorder %s149, %s163
    %p165 = scmp.eq.s32.totalorder %s18, 0
    %p166 = por %p164, %p165
    %s167 = ssub.s32 %s19, %s31
    %s168 = ssub.s32 %s20, %s27
    %s169 = sor.u32 %s167, %s168
    %p170 = scmp.eq.s32.totalorder %s169, 0
    %s172 = sadd.s32 %s171, 1
    %s173 = scalar_select %p170, %s171, %s172
    %p176 = pneg %p170
    %p177 = scmp.eq.s32.totalorder %s12, 3
    %p178 = por %p176, %p177
    %p179 = scmp.ne.s32.totalorder %s171, %s174
    %p180 = scmp.eq.s32.totalorder %s12, 0
    %p181 = por %p179, %p180
    %p182 = scmp.ne.s32.totalorder %s171, %s174
    %p183 = scmp.eq.s32.totalorder %s17, 3
    %p184 = por %p182, %p183
    %p185 = scmp.ne.s32.totalorder %s174, %s175
    %p186 = scmp.eq.s32.totalorder %s17, 0
    %p187 = por %p185, %p186
    %p188 = scmp.ne.s32.totalorder %s174, %s175
    %p189 = scmp.eq.s32.totalorder %s18, 3
    %p190 = por %p188, %p189
    %p192 = scmp.ne.s32.totalorder %s175, %s191
    %p193 = scmp.eq.s32.totalorder %s18, 0
    %p194 = por %p192, %p193
    %p195 = scmp.le.s32.totalorder 1, %s12
    %p196 = scmp.lt.s32.totalorder %s12, 5
    %p197 = pnand %p195, %p196
    %p198 = pneg %p197
    // Predicated region
    $region9: #{tpu_custom_call.1} parent=5 // pred_check
      _
    $region10: #{tpu_custom_call.1} parent=5 // pred_check_branch
      %200 = sbr.rel (%p197) target = $region12
    $region11: #{tpu_custom_call.1} parent=5 // pred_region
      %s201 = ssub.s32 %s12, 1
      // Predicated region
      $region13: #{tpu_custom_call.1} parent=11 // pred_check
        %p202 = pneg %p75
      $region14: #{tpu_custom_call.1} parent=11 // pred_check_branch
        %204 = sbr.rel (%p202) target = $region16
      $region15: #{tpu_custom_call.1} parent=11 // pred_region
        _
      $region16: #{tpu_custom_call.1} parent=11 // pred_fallthru
        _
      // Predicated region
      $region17: #{tpu_custom_call.1} parent=11 // pred_check
        %p205 = pneg %p96
      $region18: #{tpu_custom_call.1} parent=11 // pred_check_branch
        %207 = sbr.rel (%p205) target = $region20
      $region19: #{tpu_custom_call.1} parent=11 // pred_region
        _
      $region20: #{tpu_custom_call.1} parent=11 // pred_fallthru
        _
      // Predicated region
      $region21: #{tpu_custom_call.1} parent=11 // pred_check
        %p208 = pneg %p117
      $region22: #{tpu_custom_call.1} parent=11 // pred_check_branch
        %210 = sbr.rel (%p208) target = $region24
      $region23: #{tpu_custom_call.1} parent=11 // pred_region
        _
      $region24: #{tpu_custom_call.1} parent=11 // pred_fallthru
        _
      // Predicated region
      $region25: #{tpu_custom_call.1} parent=11 // pred_check
        %p211 = pneg %p138
      $region26: #{tpu_custom_call.1} parent=11 // pred_check_branch
        %213 = sbr.rel (%p211) target = $region28
      $region27: #{tpu_custom_call.1} parent=11 // pred_region
        _
      $region28: #{tpu_custom_call.1} parent=11 // pred_fallthru
        _
      // Predicated region
      $region29: #{tpu_custom_call.1} parent=11 // pred_check
        %p214 = pneg %p159
      $region30: #{tpu_custom_call.1} parent=11 // pred_check_branch
        %216 = sbr.rel (%p214) target = $region32
      $region31: #{tpu_custom_call.1} parent=11 // pred_region
        _
      $region32: #{tpu_custom_call.1} parent=11 // pred_fallthru
        _
    $region12: #{tpu_custom_call.1} parent=5 // pred_fallthru
      _
    %p217 = scmp.lt.s32.totalorder %s12, 4
    // Predicated region
    $region33: #{tpu_custom_call.1} parent=5 // pred_check
      %p218 = pneg %p217
    $region34: #{tpu_custom_call.1} parent=5 // pred_check_branch
      %220 = sbr.rel (%p218) target = $region36
    $region35: #{tpu_custom_call.1} parent=5 // pred_region
      // Predicated region
      $region37: #{tpu_custom_call.1} parent=35 // pred_check
        %p221 = pneg %p48
      $region38: #{tpu_custom_call.1} parent=35 // pred_check_branch
        %223 = sbr.rel (%p221) target = $region40
      $region39: #{tpu_custom_call.1} parent=35 // pred_region
        %s224 = smul.u32 %s19, 2
        %s225 = sadd.s32 %s224, %s20
        %p226 = scmp.lt.s32.totalorder %s225, 3
        %s227 = scalar_select %p226, %s225, 3
        %s228 = smul.addr %s227, 30
        %s229 = smul.addr %s228, 8
        %s230 = scalar_lea.vmem %s0, %s229
        %s231 = smul.u32 %s19, 2
        %s232 = sadd.s32 %s231, %s20
      $region40: #{tpu_custom_call.1} parent=35 // pred_fallthru
        _
    $region36: #{tpu_custom_call.1} parent=5 // pred_fallthru
      _
    %p233 = scmp.le.s32.totalorder 1, %s12
    %p234 = scmp.lt.s32.totalorder %s12, 5
    %p235 = pnand %p233, %p234
    %p236 = pneg %p235
    // Predicated region
    $region41: #{tpu_custom_call.1} parent=5 // pred_check
      _
    $region42: #{tpu_custom_call.1} parent=5 // pred_check_branch
      %238 = sbr.rel (%p235) target = $region44
    $region43: #{tpu_custom_call.1} parent=5 // pred_region
      %s239 = ssub.s32 %s12, 1
      %s240 = smul.u32 %s21, 2
      %s241 = sadd.s32 %s240, %s22
      %p242 = scmp.lt.s32.totalorder %s241, 3
      %s243 = scalar_select %p242, %s241, 3
      %s244 = smul.addr %s243, 30
      %s245 = smul.addr %s244, 8
      %s246 = scalar_lea.vmem %s0, %s245
      %p247 = pneg %p54
      %p248 = pneg %p51
      %p249 = pneg %p75
      %p250 = pneg %p72
      %p251 = pneg %p96
      %p252 = pneg %p93
      %p253 = pneg %p117
      %p254 = pneg %p114
      %p255 = pneg %p138
      %p256 = pneg %p135
      %p257 = pneg %p159
      %p258 = pneg %p156
      %p259 = pneg %p187
      %p260 = pneg %p184
      %s261 = smul.u32 8, %s22
      %p262 = scmp.lt.s32.totalorder %s21, 1
      %s263 = scalar_select %p262, %s21, 1
      %p264 = scmp.lt.s32.totalorder %s261, 15
      %s265 = scalar_select %p264, %s261, 15
      %s266 = smul.addr %s265, 2
      %s267 = smul.addr %s263, 32
      %s268 = sadd.s32 %s266, %s267
      %s269 = smul.addr %s268, 8
      %s270 = scalar_lea.vmem %s6, %s269
      %s271 = smul.u32 %s21, 2
      %s272 = sadd.s32 %s271, %s22
      %p273 = scmp.lt.s32.totalorder %s272, 3
      %s274 = scalar_select %p273, %s272, 3
      %s275 = smul.addr %s274, 30
      %s276 = smul.addr %s275, 8
      %s277 = scalar_lea.vmem %s0, %s276
      %s278 = smul.u32 %s21, 2
      %s279 = sadd.s32 %s278, %s22
      %s280 = smul.u32 8, %s22
      %p281 = scmp.lt.s32.totalorder %s21, 1
      %s282 = scalar_select %p281, %s21, 1
      %p283 = scmp.lt.s32.totalorder %s280, 15
      %s284 = scalar_select %p283, %s280, 15
      %s285 = smul.addr %s284, 2
      %s286 = smul.addr %s282, 32
      %s287 = sadd.s32 %s285, %s286
      %s288 = smul.addr %s287, 8
      %s289 = scalar_lea.vmem %s6, %s288
      %s290 = smul.u32 8, %s22
      %v292 = vld [vmem:[%s1] sm:$0xff]
      %v293 = vld [vmem:[%s1 + $0x8] sm:$0xff]
      %v294 = vld [vmem:[%s1 + $0x10] sm:$0x3]
      %v295 = vld [vmem:[%s277] sm:$0xff]
      %v296 = vld [vmem:[%s277 + $0x8] sm:$0xff]
      %v297 = vld [vmem:[%s277 + $0x18] sm:$0xff]
      %v298 = vld [vmem:[%s277 + $0x20] sm:$0xff]
      %v299 = vld [vmem:[%s277 + $0x30] sm:$0xff]
      %v300 = vld [vmem:[%s277 + $0x38] sm:$0xff]
      %v301 = vld [vmem:[%s277 + $0x48] sm:$0xff]
      %v302 = vld [vmem:[%s277 + $0x50] sm:$0xff]
      %v303 = vld [vmem:[%s277 + $0x60] sm:$0xff]
      %v304 = vld [vmem:[%s277 + $0x68] sm:$0xff]
      %v305 = vld [vmem:[%s277 + $0x78] sm:$0xff]
      %v306 = vld [vmem:[%s277 + $0x80] sm:$0xff]
      %v307 = vld [vmem:[%s277 + $0x90] sm:$0xff]
      %v308 = vld [vmem:[%s277 + $0x98] sm:$0xff]
      %v309 = vld [vmem:[%s277 + $0xa8] sm:$0xff]
      %v310 = vld [vmem:[%s277 + $0xb0] sm:$0xff]
      %v311 = vld [vmem:[%s277 + $0xc0] sm:$0xff]
      %v312 = vld [vmem:[%s277 + $0xc8] sm:$0xff]
      %v313 = vld [vmem:[%s277 + $0xd8] sm:$0xff]
      %v314 = vld [vmem:[%s277 + $0xe0] sm:$0xff]
      %v315 = vld [vmem:[%s277 + $0x1] sm:$0xff]
      %v316 = vld [vmem:[%s277 + $0x9] sm:$0xff]
      %v317 = vld [vmem:[%s277 + $0x19] sm:$0xff]
      %v318 = vld [vmem:[%s277 + $0x21] sm:$0xff]
      %v319 = vld [vmem:[%s277 + $0x31] sm:$0xff]
      %v320 = vld [vmem:[%s277 + $0x39] sm:$0xff]
      %v321 = vld [vmem:[%s277 + $0x49] sm:$0xff]
      %v322 = vld [vmem:[%s277 + $0x51] sm:$0xff]
      %v323 = vld [vmem:[%s277 + $0x61] sm:$0xff]
      %v324 = vld [vmem:[%s277 + $0x69] sm:$0xff]
      %v325 = vld [vmem:[%s277 + $0x79] sm:$0xff]
      %v326 = vld [vmem:[%s277 + $0x81] sm:$0xff]
      %v327 = vld [vmem:[%s277 + $0x91] sm:$0xff]
      %v328 = vld [vmem:[%s277 + $0x99] sm:$0xff]
      %v329 = vld [vmem:[%s277 + $0xa9] sm:$0xff]
      %v330 = vld [vmem:[%s277 + $0xb1] sm:$0xff]
      %v331 = vld [vmem:[%s277 + $0xc1] sm:$0xff]
      %v332 = vld [vmem:[%s277 + $0xc9] sm:$0xff]
      %v333 = vld [vmem:[%s277 + $0xd9] sm:$0xff]
      %v334 = vld [vmem:[%s277 + $0xe1] sm:$0xff]
      %v335 = vld [vmem:[%s277 + $0x2] sm:$0xff]
      %v336 = vld [vmem:[%s277 + $0xa] sm:$0xff]
      %v337 = vld [vmem:[%s277 + $0x1a] sm:$0xff]
      %v338 = vld [vmem:[%s277 + $0x22] sm:$0xff]
      %v339 = vld [vmem:[%s277 + $0x32] sm:$0xff]
      %v340 = vld [vmem:[%s277 + $0x3a] sm:$0xff]
      %v341 = vld [vmem:[%s277 + $0x4a] sm:$0xff]
      %v342 = vld [vmem:[%s277 + $0x52] sm:$0xff]
      %v343 = vld [vmem:[%s277 + $0x62] sm:$0xff]
      %v344 = vld [vmem:[%s277 + $0x6a] sm:$0xff]
      %v345 = vld [vmem:[%s277 + $0x7a] sm:$0xff]
      %v346 = vld [vmem:[%s277 + $0x82] sm:$0xff]
      %v347 = vld [vmem:[%s277 + $0x92] sm:$0xff]
      %v348 = vld [vmem:[%s277 + $0x9a] sm:$0xff]
      %v349 = vld [vmem:[%s277 + $0xaa] sm:$0xff]
      %v350 = vld [vmem:[%s277 + $0xb2] sm:$0xff]
      %v351 = vld [vmem:[%s277 + $0xc2] sm:$0xff]
      %v352 = vld [vmem:[%s277 + $0xca] sm:$0xff]
      %v353 = vld [vmem:[%s277 + $0xda] sm:$0xff]
      %v354 = vld [vmem:[%s277 + $0xe2] sm:$0xff]
      %v355 = vlaneseq
      %v356 = vshrl.u32 %v355, 7
      %v357 = vsub.s32 0, %v356
      %v358 = vrot.slane %v292, %v357
      %v359 = vmul.f32 %v295, %v358
      %v360 = vmul.f32 %v296, %v358
      %v361 = vmul.f32 %v297, %v358
      %v362 = vmul.f32 %v298, %v358
      %v363 = vmul.f32 %v299, %v358
      %v364 = vmul.f32 %v300, %v358
      %v365 = vmul.f32 %v301, %v358
      %v366 = vmul.f32 %v302, %v358
      %v367 = vmul.f32 %v303, %v358
      %v368 = vmul.f32 %v304, %v358
      %v369 = vmul.f32 %v305, %v358
      %v370 = vmul.f32 %v306, %v358
      %v371 = vmul.f32 %v307, %v358
      %v372 = vmul.f32 %v308, %v358
      %v373 = vmul.f32 %v309, %v358
      %v374 = vmul.f32 %v310, %v358
      %v375 = vadd.f32 %v359, 0.0
      %v376 = vadd.f32 %v360, 0.0
      %v377 = vadd.f32 %v361, 0.0
      %v378 = vadd.f32 %v362, 0.0
      %v379 = vadd.f32 %v363, 0.0
      %v380 = vadd.f32 %v364, 0.0
      %v381 = vadd.f32 %v365, 0.0
      %v382 = vadd.f32 %v366, 0.0
      %v383 = vadd.f32 %v367, 0.0
      %v384 = vadd.f32 %v368, 0.0
      %v385 = vadd.f32 %v369, 0.0
      %v386 = vadd.f32 %v370, 0.0
      %v387 = vadd.f32 %v371, 0.0
      %v388 = vadd.f32 %v372, 0.0
      %v389 = vadd.f32 %v373, 0.0
      %v390 = vadd.f32 %v374, 0.0
      %v391 = vlaneseq
      %v392 = vshrl.u32 %v391, 7
      %v393 = vsub.s32 1, %v392
      %v394 = vrot.slane %v293, %v393
      %v395 = vmul.f32 %v295, %v394
      %v396 = vmul.f32 %v296, %v394
      %v397 = vmul.f32 %v297, %v394
      %v398 = vmul.f32 %v298, %v394
      %v399 = vmul.f32 %v299, %v394
      %v400 = vmul.f32 %v300, %v394
      %v401 = vmul.f32 %v301, %v394
      %v402 = vmul.f32 %v302, %v394
      %v403 = vmul.f32 %v303, %v394
      %v404 = vmul.f32 %v304, %v394
      %v405 = vmul.f32 %v305, %v394
      %v406 = vmul.f32 %v306, %v394
      %v407 = vmul.f32 %v307, %v394
      %v408 = vmul.f32 %v308, %v394
      %v409 = vmul.f32 %v309, %v394
      %v410 = vmul.f32 %v310, %v394
      %v411 = vadd.f32 %v395, 0.0
      %v412 = vadd.f32 %v396, 0.0
      %v413 = vadd.f32 %v397, 0.0
      %v414 = vadd.f32 %v398, 0.0
      %v415 = vadd.f32 %v399, 0.0
      %v416 = vadd.f32 %v400, 0.0
      %v417 = vadd.f32 %v401, 0.0
      %v418 = vadd.f32 %v402, 0.0
      %v419 = vadd.f32 %v403, 0.0
      %v420 = vadd.f32 %v404, 0.0
      %v421 = vadd.f32 %v405, 0.0
      %v422 = vadd.f32 %v406, 0.0
      %v423 = vadd.f32 %v407, 0.0
      %v424 = vadd.f32 %v408, 0.0
      %v425 = vadd.f32 %v409, 0.0
      %v426 = vadd.f32 %v410, 0.0
      %v427 = vlaneseq
      %v428 = vshrl.u32 %v427, 7
      %v429 = vsub.s32 1, %v428
      %v430 = vrot.slane %v292, %v429
      %v431 = vmul.f32 %v315, %v430
      %v432 = vmul.f32 %v316, %v430
      %v433 = vmul.f32 %v317, %v430
      %v434 = vmul.f32 %v318, %v430
      %v435 = vmul.f32 %v319, %v430
      %v436 = vmul.f32 %v320, %v430
      %v437 = vmul.f32 %v321, %v430
      %v438 = vmul.f32 %v322, %v430
      %v439 = vmul.f32 %v323, %v430
      %v440 = vmul.f32 %v324, %v430
      %v441 = vmul.f32 %v325, %v430
      %v442 = vmul.f32 %v326, %v430
      %v443 = vmul.f32 %v327, %v430
      %v444 = vmul.f32 %v328, %v430
      %v445 = vmul.f32 %v329, %v430
      %v446 = vmul.f32 %v330, %v430
      %v447 = vadd.f32 %v375, %v431
      %v448 = vadd.f32 %v376, %v432
      %v449 = vadd.f32 %v377, %v433
      %v450 = vadd.f32 %v378, %v434
      %v451 = vadd.f32 %v379, %v435
      %v452 = vadd.f32 %v380, %v436
      %v453 = vadd.f32 %v381, %v437
      %v454 = vadd.f32 %v382, %v438
      %v455 = vadd.f32 %v383, %v439
      %v456 = vadd.f32 %v384, %v440
      %v457 = vadd.f32 %v385, %v441
      %v458 = vadd.f32 %v386, %v442
      %v459 = vadd.f32 %v387, %v443
      %v460 = vadd.f32 %v388, %v444
      %v461 = vadd.f32 %v389, %v445
      %v462 = vadd.f32 %v390, %v446
      %v463 = vlaneseq
      %v464 = vshrl.u32 %v463, 7
      %v465 = vsub.s32 2, %v464
      %v466 = vrot.slane %v293, %v465
      %v467 = vmul.f32 %v315, %v466
      %v468 = vmul.f32 %v316, %v466
      %v469 = vmul.f32 %v317, %v466
      %v470 = vmul.f32 %v318, %v466
      %v471 = vmul.f32 %v319, %v466
      %v472 = vmul.f32 %v320, %v466
      %v473 = vmul.f32 %v321, %v466
      %v474 = vmul.f32 %v322, %v466
      %v475 = vmul.f32 %v323, %v466
      %v476 = vmul.f32 %v324, %v466
      %v477 = vmul.f32 %v325, %v466
      %v478 = vmul.f32 %v326, %v466
      %v479 = vmul.f32 %v327, %v466
      %v480 = vmul.f32 %v328, %v466
      %v481 = vmul.f32 %v329, %v466
      %v482 = vmul.f32 %v330, %v466
      %v483 = vadd.f32 %v411, %v467
      %v484 = vadd.f32 %v412, %v468
      %v485 = vadd.f32 %v413, %v469
      %v486 = vadd.f32 %v414, %v470
      %v487 = vadd.f32 %v415, %v471
      %v488 = vadd.f32 %v416, %v472
      %v489 = vadd.f32 %v417, %v473
      %v490 = vadd.f32 %v418, %v474
      %v491 = vadd.f32 %v419, %v475
      %v492 = vadd.f32 %v420, %v476
      %v493 = vadd.f32 %v421, %v477
      %v494 = vadd.f32 %v422, %v478
      %v495 = vadd.f32 %v423, %v479
      %v496 = vadd.f32 %v424, %v480
      %v497 = vadd.f32 %v425, %v481
      %v498 = vadd.f32 %v426, %v482
      %v499 = vlaneseq
      %v500 = vshrl.u32 %v499, 7
      %v501 = vsub.s32 2, %v500
      %v502 = vrot.slane %v292, %v501
      %v503 = vmul.f32 %v335, %v502
      %v504 = vmul.f32 %v336, %v502
      %v505 = vmul.f32 %v337, %v502
      %v506 = vmul.f32 %v338, %v502
      %v507 = vmul.f32 %v339, %v502
      %v508 = vmul.f32 %v340, %v502
      %v509 = vmul.f32 %v341, %v502
      %v510 = vmul.f32 %v342, %v502
      %v511 = vmul.f32 %v343, %v502
      %v512 = vmul.f32 %v344, %v502
      %v513 = vmul.f32 %v345, %v502
      %v514 = vmul.f32 %v346, %v502
      %v515 = vmul.f32 %v347, %v502
      %v516 = vmul.f32 %v348, %v502
      %v517 = vmul.f32 %v349, %v502
      %v518 = vmul.f32 %v350, %v502
      %v519 = vadd.f32 %v447, %v503
      %v520 = vadd.f32 %v448, %v504
      %v521 = vadd.f32 %v449, %v505
      %v522 = vadd.f32 %v450, %v506
      %v523 = vadd.f32 %v451, %v507
      %v524 = vadd.f32 %v452, %v508
      %v525 = vadd.f32 %v453, %v509
      %v526 = vadd.f32 %v454, %v510
      %v527 = vadd.f32 %v455, %v511
      %v528 = vadd.f32 %v456, %v512
      %v529 = vadd.f32 %v457, %v513
      %v530 = vadd.f32 %v458, %v514
      %v531 = vadd.f32 %v459, %v515
      %v532 = vadd.f32 %v460, %v516
      %v533 = vadd.f32 %v461, %v517
      %v534 = vadd.f32 %v462, %v518
      %v535 = vlaneseq
      %v536 = vshrl.u32 %v535, 7
      %v537 = vsub.s32 3, %v536
      %v538 = vrot.slane %v293, %v537
      %v539 = vmul.f32 %v335, %v538
      %v540 = vmul.f32 %v336, %v538
      %v541 = vmul.f32 %v337, %v538
      %v542 = vmul.f32 %v338, %v538
      %v543 = vmul.f32 %v339, %v538
      %v544 = vmul.f32 %v340, %v538
      %v545 = vmul.f32 %v341, %v538
      %v546 = vmul.f32 %v342, %v538
      %v547 = vmul.f32 %v343, %v538
      %v548 = vmul.f32 %v344, %v538
      %v549 = vmul.f32 %v345, %v538
      %v550 = vmul.f32 %v346, %v538
      %v551 = vmul.f32 %v347, %v538
      %v552 = vmul.f32 %v348, %v538
      %v553 = vmul.f32 %v349, %v538
      %v554 = vmul.f32 %v350, %v538
      %v555 = vadd.f32 %v483, %v539
      %v556 = vadd.f32 %v484, %v540
      %v557 = vadd.f32 %v485, %v541
      %v558 = vadd.f32 %v486, %v542
      %v559 = vadd.f32 %v487, %v543
      %v560 = vadd.f32 %v488, %v544
      %v561 = vadd.f32 %v489, %v545
      %v562 = vadd.f32 %v490, %v546
      %v563 = vadd.f32 %v491, %v547
      %v564 = vadd.f32 %v492, %v548
      %v565 = vadd.f32 %v493, %v549
      %v566 = vadd.f32 %v494, %v550
      %v567 = vadd.f32 %v495, %v551
      %v568 = vadd.f32 %v496, %v552
      %v569 = vadd.f32 %v497, %v553
      %v570 = vadd.f32 %v498, %v554
      %v571 = vlaneseq
      %v572 = vshrl.u32 %v571, 7
      %v573 = vsub.s32 3, %v572
      %v574 = vrot.slane %v292, %v573
      %v575 = vmul.f32 %v297, %v574
      %v576 = vmul.f32 %v298, %v574
      %v577 = vmul.f32 %v299, %v574
      %v578 = vmul.f32 %v300, %v574
      %v579 = vmul.f32 %v301, %v574
      %v580 = vmul.f32 %v302, %v574
      %v581 = vmul.f32 %v303, %v574
      %v582 = vmul.f32 %v304, %v574
      %v583 = vmul.f32 %v305, %v574
      %v584 = vmul.f32 %v306, %v574
      %v585 = vmul.f32 %v307, %v574
      %v586 = vmul.f32 %v308, %v574
      %v587 = vmul.f32 %v309, %v574
      %v588 = vmul.f32 %v310, %v574
      %v589 = vmul.f32 %v311, %v574
      %v590 = vmul.f32 %v312, %v574
      %v591 = vadd.f32 %v519, %v575
      %v592 = vadd.f32 %v520, %v576
      %v593 = vadd.f32 %v521, %v577
      %v594 = vadd.f32 %v522, %v578
      %v595 = vadd.f32 %v523, %v579
      %v596 = vadd.f32 %v524, %v580
      %v597 = vadd.f32 %v525, %v581
      %v598 = vadd.f32 %v526, %v582
      %v599 = vadd.f32 %v527, %v583
      %v600 = vadd.f32 %v528, %v584
      %v601 = vadd.f32 %v529, %v585
      %v602 = vadd.f32 %v530, %v586
      %v603 = vadd.f32 %v531, %v587
      %v604 = vadd.f32 %v532, %v588
      %v605 = vadd.f32 %v533, %v589
      %v606 = vadd.f32 %v534, %v590
      %v607 = vlaneseq
      %v608 = vshrl.u32 %v607, 7
      %v609 = vsub.s32 4, %v608
      %v610 = vrot.slane %v293, %v609
      %v611 = vmul.f32 %v297, %v610
      %v612 = vmul.f32 %v298, %v610
      %v613 = vmul.f32 %v299, %v610
      %v614 = vmul.f32 %v300, %v610
      %v615 = vmul.f32 %v301, %v610
      %v616 = vmul.f32 %v302, %v610
      %v617 = vmul.f32 %v303, %v610
      %v618 = vmul.f32 %v304, %v610
      %v619 = vmul.f32 %v305, %v610
      %v620 = vmul.f32 %v306, %v610
      %v621 = vmul.f32 %v307, %v610
      %v622 = vmul.f32 %v308, %v610
      %v623 = vmul.f32 %v309, %v610
      %v624 = vmul.f32 %v310, %v610
      %v625 = vmul.f32 %v311, %v610
      %v626 = vmul.f32 %v312, %v610
      %v627 = vadd.f32 %v555, %v611
      %v628 = vadd.f32 %v556, %v612
      %v629 = vadd.f32 %v557, %v613
      %v630 = vadd.f32 %v558, %v614
      %v631 = vadd.f32 %v559, %v615
      %v632 = vadd.f32 %v560, %v616
      %v633 = vadd.f32 %v561, %v617
      %v634 = vadd.f32 %v562, %v618
      %v635 = vadd.f32 %v563, %v619
      %v636 = vadd.f32 %v564, %v620
      %v637 = vadd.f32 %v565, %v621
      %v638 = vadd.f32 %v566, %v622
      %v639 = vadd.f32 %v567, %v623
      %v640 = vadd.f32 %v568, %v624
      %v641 = vadd.f32 %v569, %v625
      %v642 = vadd.f32 %v570, %v626
      %v643 = vlaneseq
      %v644 = vshrl.u32 %v643, 7
      %v645 = vsub.s32 4, %v644
      %v646 = vrot.slane %v292, %v645
      %v647 = vmul.f32 %v317, %v646
      %v648 = vmul.f32 %v318, %v646
      %v649 = vmul.f32 %v319, %v646
      %v650 = vmul.f32 %v320, %v646
      %v651 = vmul.f32 %v321, %v646
      %v652 = vmul.f32 %v322, %v646
      %v653 = vmul.f32 %v323, %v646
      %v654 = vmul.f32 %v324, %v646
      %v655 = vmul.f32 %v325, %v646
      %v656 = vmul.f32 %v326, %v646
      %v657 = vmul.f32 %v327, %v646
      %v658 = vmul.f32 %v328, %v646
      %v659 = vmul.f32 %v329, %v646
      %v660 = vmul.f32 %v330, %v646
      %v661 = vmul.f32 %v331, %v646
      %v662 = vmul.f32 %v332, %v646
      %v663 = vadd.f32 %v591, %v647
      %v664 = vadd.f32 %v592, %v648
      %v665 = vadd.f32 %v593, %v649
      %v666 = vadd.f32 %v594, %v650
      %v667 = vadd.f32 %v595, %v651
      %v668 = vadd.f32 %v596, %v652
      %v669 = vadd.f32 %v597, %v653
      %v670 = vadd.f32 %v598, %v654
      %v671 = vadd.f32 %v599, %v655
      %v672 = vadd.f32 %v600, %v656
      %v673 = vadd.f32 %v601, %v657
      %v674 = vadd.f32 %v602, %v658
      %v675 = vadd.f32 %v603, %v659
      %v676 = vadd.f32 %v604, %v660
      %v677 = vadd.f32 %v605, %v661
      %v678 = vadd.f32 %v606, %v662
      %v679 = vlaneseq
      %v680 = vshrl.u32 %v679, 7
      %v681 = vsub.s32 5, %v680
      %v682 = vrot.slane %v293, %v681
      %v683 = vmul.f32 %v317, %v682
      %v684 = vmul.f32 %v318, %v682
      %v685 = vmul.f32 %v319, %v682
      %v686 = vmul.f32 %v320, %v682
      %v687 = vmul.f32 %v321, %v682
      %v688 = vmul.f32 %v322, %v682
      %v689 = vmul.f32 %v323, %v682
      %v690 = vmul.f32 %v324, %v682
      %v691 = vmul.f32 %v325, %v682
      %v692 = vmul.f32 %v326, %v682
      %v693 = vmul.f32 %v327, %v682
      %v694 = vmul.f32 %v328, %v682
      %v695 = vmul.f32 %v329, %v682
      %v696 = vmul.f32 %v330, %v682
      %v697 = vmul.f32 %v331, %v682
      %v698 = vmul.f32 %v332, %v682
      %v699 = vadd.f32 %v627, %v683
      %v700 = vadd.f32 %v628, %v684
      %v701 = vadd.f32 %v629, %v685
      %v702 = vadd.f32 %v630, %v686
      %v703 = vadd.f32 %v631, %v687
      %v704 = vadd.f32 %v632, %v688
      %v705 = vadd.f32 %v633, %v689
      %v706 = vadd.f32 %v634, %v690
      %v707 = vadd.f32 %v635, %v691
      %v708 = vadd.f32 %v636, %v692
      %v709 = vadd.f32 %v637, %v693
      %v710 = vadd.f32 %v638, %v694
      %v711 = vadd.f32 %v639, %v695
      %v712 = vadd.f32 %v640, %v696
      %v713 = vadd.f32 %v641, %v697
      %v714 = vadd.f32 %v642, %v698
      %v715 = vlaneseq
      %v716 = vshrl.u32 %v715, 7
      %v717 = vsub.s32 5, %v716
      %v718 = vrot.slane %v292, %v717
      %v719 = vmul.f32 %v337, %v718
      %v720 = vmul.f32 %v338, %v718
      %v721 = vmul.f32 %v339, %v718
      %v722 = vmul.f32 %v340, %v718
      %v723 = vmul.f32 %v341, %v718
      %v724 = vmul.f32 %v342, %v718
      %v725 = vmul.f32 %v343, %v718
      %v726 = vmul.f32 %v344, %v718
      %v727 = vmul.f32 %v345, %v718
      %v728 = vmul.f32 %v346, %v718
      %v729 = vmul.f32 %v347, %v718
      %v730 = vmul.f32 %v348, %v718
      %v731 = vmul.f32 %v349, %v718
      %v732 = vmul.f32 %v350, %v718
      %v733 = vmul.f32 %v351, %v718
      %v734 = vmul.f32 %v352, %v718
      %v735 = vadd.f32 %v663, %v719
      %v736 = vadd.f32 %v664, %v720
      %v737 = vadd.f32 %v665, %v721
      %v738 = vadd.f32 %v666, %v722
      %v739 = vadd.f32 %v667, %v723
      %v740 = vadd.f32 %v668, %v724
      %v741 = vadd.f32 %v669, %v725
      %v742 = vadd.f32 %v670, %v726
      %v743 = vadd.f32 %v671, %v727
      %v744 = vadd.f32 %v672, %v728
      %v745 = vadd.f32 %v673, %v729
      %v746 = vadd.f32 %v674, %v730
      %v747 = vadd.f32 %v675, %v731
      %v748 = vadd.f32 %v676, %v732
      %v749 = vadd.f32 %v677, %v733
      %v750 = vadd.f32 %v678, %v734
      %v751 = vlaneseq
      %v752 = vshrl.u32 %v751, 7
      %v753 = vsub.s32 6, %v752
      %v754 = vrot.slane %v293, %v753
      %v755 = vmul.f32 %v337, %v754
      %v756 = vmul.f32 %v338, %v754
      %v757 = vmul.f32 %v339, %v754
      %v758 = vmul.f32 %v340, %v754
      %v759 = vmul.f32 %v341, %v754
      %v760 = vmul.f32 %v342, %v754
      %v761 = vmul.f32 %v343, %v754
      %v762 = vmul.f32 %v344, %v754
      %v763 = vmul.f32 %v345, %v754
      %v764 = vmul.f32 %v346, %v754
      %v765 = vmul.f32 %v347, %v754
      %v766 = vmul.f32 %v348, %v754
      %v767 = vmul.f32 %v349, %v754
      %v768 = vmul.f32 %v350, %v754
      %v769 = vmul.f32 %v351, %v754
      %v770 = vmul.f32 %v352, %v754
      %v771 = vadd.f32 %v699, %v755
      %v772 = vadd.f32 %v700, %v756
      %v773 = vadd.f32 %v701, %v757
      %v774 = vadd.f32 %v702, %v758
      %v775 = vadd.f32 %v703, %v759
      %v776 = vadd.f32 %v704, %v760
      %v777 = vadd.f32 %v705, %v761
      %v778 = vadd.f32 %v706, %v762
      %v779 = vadd.f32 %v707, %v763
      %v780 = vadd.f32 %v708, %v764
      %v781 = vadd.f32 %v709, %v765
      %v782 = vadd.f32 %v710, %v766
      %v783 = vadd.f32 %v711, %v767
      %v784 = vadd.f32 %v712, %v768
      %v785 = vadd.f32 %v713, %v769
      %v786 = vadd.f32 %v714, %v770
      %v787 = vlaneseq
      %v788 = vshrl.u32 %v787, 7
      %v789 = vsub.s32 6, %v788
      %v790 = vrot.slane %v292, %v789
      %v791 = vmul.f32 %v299, %v790
      %v792 = vmul.f32 %v300, %v790
      %v793 = vmul.f32 %v301, %v790
      %v794 = vmul.f32 %v302, %v790
      %v795 = vmul.f32 %v303, %v790
      %v796 = vmul.f32 %v304, %v790
      %v797 = vmul.f32 %v305, %v790
      %v798 = vmul.f32 %v306, %v790
      %v799 = vmul.f32 %v307, %v790
      %v800 = vmul.f32 %v308, %v790
      %v801 = vmul.f32 %v309, %v790
      %v802 = vmul.f32 %v310, %v790
      %v803 = vmul.f32 %v311, %v790
      %v804 = vmul.f32 %v312, %v790
      %v805 = vmul.f32 %v313, %v790
      %v806 = vmul.f32 %v314, %v790
      %v807 = vadd.f32 %v735, %v791
      %v808 = vadd.f32 %v736, %v792
      %v809 = vadd.f32 %v737, %v793
      %v810 = vadd.f32 %v738, %v794
      %v811 = vadd.f32 %v739, %v795
      %v812 = vadd.f32 %v740, %v796
      %v813 = vadd.f32 %v741, %v797
      %v814 = vadd.f32 %v742, %v798
      %v815 = vadd.f32 %v743, %v799
      %v816 = vadd.f32 %v744, %v800
      %v817 = vadd.f32 %v745, %v801
      %v818 = vadd.f32 %v746, %v802
      %v819 = vadd.f32 %v747, %v803
      %v820 = vadd.f32 %v748, %v804
      %v821 = vadd.f32 %v749, %v805
      %v822 = vadd.f32 %v750, %v806
      %v823 = vlaneseq
      %v824 = vshrl.u32 %v823, 7
      %v825 = vsub.s32 7, %v824
      %v826 = vrot.slane %v293, %v825
      %v827 = vmul.f32 %v299, %v826
      %v828 = vmul.f32 %v300, %v826
      %v829 = vmul.f32 %v301, %v826
      %v830 = vmul.f32 %v302, %v826
      %v831 = vmul.f32 %v303, %v826
      %v832 = vmul.f32 %v304, %v826
      %v833 = vmul.f32 %v305, %v826
      %v834 = vmul.f32 %v306, %v826
      %v835 = vmul.f32 %v307, %v826
      %v836 = vmul.f32 %v308, %v826
      %v837 = vmul.f32 %v309, %v826
      %v838 = vmul.f32 %v310, %v826
      %v839 = vmul.f32 %v311, %v826
      %v840 = vmul.f32 %v312, %v826
      %v841 = vmul.f32 %v313, %v826
      %v842 = vmul.f32 %v314, %v826
      %v843 = vadd.f32 %v771, %v827
      %v844 = vadd.f32 %v772, %v828
      %v845 = vadd.f32 %v773, %v829
      %v846 = vadd.f32 %v774, %v830
      %v847 = vadd.f32 %v775, %v831
      %v848 = vadd.f32 %v776, %v832
      %v849 = vadd.f32 %v777, %v833
      %v850 = vadd.f32 %v778, %v834
      %v851 = vadd.f32 %v779, %v835
      %v852 = vadd.f32 %v780, %v836
      %v853 = vadd.f32 %v781, %v837
      %v854 = vadd.f32 %v782, %v838
      %v855 = vadd.f32 %v783, %v839
      %v856 = vadd.f32 %v784, %v840
      %v857 = vadd.f32 %v785, %v841
      %v858 = vadd.f32 %v786, %v842
      %v859 = vlaneseq
      %v860 = vshrl.u32 %v859, 7
      %v861 = vsub.s32 7, %v860
      %v862 = vrot.slane %v292, %v861
      %v863 = vmul.f32 %v319, %v862
      %v864 = vmul.f32 %v320, %v862
      %v865 = vmul.f32 %v321, %v862
      %v866 = vmul.f32 %v322, %v862
      %v867 = vmul.f32 %v323, %v862
      %v868 = vmul.f32 %v324, %v862
      %v869 = vmul.f32 %v325, %v862
      %v870 = vmul.f32 %v326, %v862
      %v871 = vmul.f32 %v327, %v862
      %v872 = vmul.f32 %v328, %v862
      %v873 = vmul.f32 %v329, %v862
      %v874 = vmul.f32 %v330, %v862
      %v875 = vmul.f32 %v331, %v862
      %v876 = vmul.f32 %v332, %v862
      %v877 = vmul.f32 %v333, %v862
      %v878 = vmul.f32 %v334, %v862
      %v879 = vadd.f32 %v807, %v863
      %v880 = vadd.f32 %v808, %v864
      %v881 = vadd.f32 %v809, %v865
      %v882 = vadd.f32 %v810, %v866
      %v883 = vadd.f32 %v811, %v867
      %v884 = vadd.f32 %v812, %v868
      %v885 = vadd.f32 %v813, %v869
      %v886 = vadd.f32 %v814, %v870
      %v887 = vadd.f32 %v815, %v871
      %v888 = vadd.f32 %v816, %v872
      %v889 = vadd.f32 %v817, %v873
      %v890 = vadd.f32 %v818, %v874
      %v891 = vadd.f32 %v819, %v875
      %v892 = vadd.f32 %v820, %v876
      %v893 = vadd.f32 %v821, %v877
      %v894 = vadd.f32 %v822, %v878
      %v895 = vlaneseq
      %v896 = vshrl.u32 %v895, 7
      %v897 = vsub.s32 0, %v896
      %v898 = vrot.slane %v294, %v897
      %v899 = vmul.f32 %v319, %v898
      %v900 = vmul.f32 %v320, %v898
      %v901 = vmul.f32 %v321, %v898
      %v902 = vmul.f32 %v322, %v898
      %v903 = vmul.f32 %v323, %v898
      %v904 = vmul.f32 %v324, %v898
      %v905 = vmul.f32 %v325, %v898
      %v906 = vmul.f32 %v326, %v898
      %v907 = vmul.f32 %v327, %v898
      %v908 = vmul.f32 %v328, %v898
      %v909 = vmul.f32 %v329, %v898
      %v910 = vmul.f32 %v330, %v898
      %v911 = vmul.f32 %v331, %v898
      %v912 = vmul.f32 %v332, %v898
      %v913 = vmul.f32 %v333, %v898
      %v914 = vmul.f32 %v334, %v898
      %v915 = vadd.f32 %v843, %v899
      %v916 = vadd.f32 %v844, %v900
      %v917 = vadd.f32 %v845, %v901
      %v918 = vadd.f32 %v846, %v902
      %v919 = vadd.f32 %v847, %v903
      %v920 = vadd.f32 %v848, %v904
      %v921 = vadd.f32 %v849, %v905
      %v922 = vadd.f32 %v850, %v906
      %v923 = vadd.f32 %v851, %v907
      %v924 = vadd.f32 %v852, %v908
      %v925 = vadd.f32 %v853, %v909
      %v926 = vadd.f32 %v854, %v910
      %v927 = vadd.f32 %v855, %v911
      %v928 = vadd.f32 %v856, %v912
      %v929 = vadd.f32 %v857, %v913
      %v930 = vadd.f32 %v858, %v914
      %v931 = vlaneseq
      %v932 = vshrl.u32 %v931, 7
      %v933 = vsub.s32 0, %v932
      %v934 = vrot.slane %v293, %v933
      %v935 = vmul.f32 %v339, %v934
      %v936 = vmul.f32 %v340, %v934
      %v937 = vmul.f32 %v341, %v934
      %v938 = vmul.f32 %v342, %v934
      %v939 = vmul.f32 %v343, %v934
      %v940 = vmul.f32 %v344, %v934
      %v941 = vmul.f32 %v345, %v934
      %v942 = vmul.f32 %v346, %v934
      %v943 = vmul.f32 %v347, %v934
      %v944 = vmul.f32 %v348, %v934
      %v945 = vmul.f32 %v349, %v934
      %v946 = vmul.f32 %v350, %v934
      %v947 = vmul.f32 %v351, %v934
      %v948 = vmul.f32 %v352, %v934
      %v949 = vmul.f32 %v353, %v934
      %v950 = vmul.f32 %v354, %v934
      %v951 = vadd.f32 %v879, %v935
      %v952 = vadd.f32 %v880, %v936
      %v953 = vadd.f32 %v881, %v937
      %v954 = vadd.f32 %v882, %v938
      %v955 = vadd.f32 %v883, %v939
      %v956 = vadd.f32 %v884, %v940
      %v957 = vadd.f32 %v885, %v941
      %v958 = vadd.f32 %v886, %v942
      %v959 = vadd.f32 %v887, %v943
      %v960 = vadd.f32 %v888, %v944
      %v961 = vadd.f32 %v889, %v945
      %v962 = vadd.f32 %v890, %v946
      %v963 = vadd.f32 %v891, %v947
      %v964 = vadd.f32 %v892, %v948
      %v965 = vadd.f32 %v893, %v949
      %v966 = vadd.f32 %v894, %v950
      %v967 = vlaneseq
      %v968 = vshrl.u32 %v967, 7
      %v969 = vsub.s32 1, %v968
      %v970 = vrot.slane %v294, %v969
      %v971 = vmul.f32 %v339, %v970
      %v972 = vmul.f32 %v340, %v970
      %v973 = vmul.f32 %v341, %v970
      %v974 = vmul.f32 %v342, %v970
      %v975 = vmul.f32 %v343, %v970
      %v976 = vmul.f32 %v344, %v970
      %v977 = vmul.f32 %v345, %v970
      %v978 = vmul.f32 %v346, %v970
      %v979 = vmul.f32 %v347, %v970
      %v980 = vmul.f32 %v348, %v970
      %v981 = vmul.f32 %v349, %v970
      %v982 = vmul.f32 %v350, %v970
      %v983 = vmul.f32 %v351, %v970
      %v984 = vmul.f32 %v352, %v970
      %v985 = vmul.f32 %v353, %v970
      %v986 = vmul.f32 %v354, %v970
      %v987 = vadd.f32 %v915, %v971
      %v988 = vadd.f32 %v916, %v972
      %v989 = vadd.f32 %v917, %v973
      %v990 = vadd.f32 %v918, %v974
      %v991 = vadd.f32 %v919, %v975
      %v992 = vadd.f32 %v920, %v976
      %v993 = vadd.f32 %v921, %v977
      %v994 = vadd.f32 %v922, %v978
      %v995 = vadd.f32 %v923, %v979
      %v996 = vadd.f32 %v924, %v980
      %v997 = vadd.f32 %v925, %v981
      %v998 = vadd.f32 %v926, %v982
      %v999 = vadd.f32 %v927, %v983
      %v1000 = vadd.f32 %v928, %v984
      %v1001 = vadd.f32 %v929, %v985
      %v1002 = vadd.f32 %v930, %v986
      %1019 = vrot.lane.b32.xlu0 %v987, 124
      %v1020 = vpop.permute.xlu0 %1019
      %1021 = vrot.lane.b32.xlu0 %v988, 124
      %v1022 = vpop.permute.xlu0 %1021
      %1023 = vrot.lane.b32.xlu0 %v989, 124
      %v1024 = vpop.permute.xlu0 %1023
      %1025 = vrot.lane.b32.xlu0 %v990, 124
      %v1026 = vpop.permute.xlu0 %1025
      %1027 = vrot.lane.b32.xlu0 %v991, 124
      %v1028 = vpop.permute.xlu0 %1027
      %1029 = vrot.lane.b32.xlu0 %v992, 124
      %v1030 = vpop.permute.xlu0 %1029
      %1031 = vrot.lane.b32.xlu0 %v993, 124
      %v1032 = vpop.permute.xlu0 %1031
      %1033 = vrot.lane.b32.xlu0 %v994, 124
      %v1034 = vpop.permute.xlu0 %1033
      %1035 = vrot.lane.b32.xlu0 %v995, 124
      %v1036 = vpop.permute.xlu0 %1035
      %1037 = vrot.lane.b32.xlu0 %v996, 124
      %v1038 = vpop.permute.xlu0 %1037
      %1039 = vrot.lane.b32.xlu0 %v997, 124
      %v1040 = vpop.permute.xlu0 %1039
      %1041 = vrot.lane.b32.xlu0 %v998, 124
      %v1042 = vpop.permute.xlu0 %1041
      %1043 = vrot.lane.b32.xlu0 %v999, 124
      %v1044 = vpop.permute.xlu0 %1043
      %1045 = vrot.lane.b32.xlu0 %v1000, 124
      %v1046 = vpop.permute.xlu0 %1045
      %1047 = vrot.lane.b32.xlu0 %v1001, 124
      %v1048 = vpop.permute.xlu0 %1047
      %1049 = vrot.lane.b32.xlu0 %v1002, 124
      %v1050 = vpop.permute.xlu0 %1049
      %1067 = vrot.lane.b32.xlu0 %v987, 4
      %v1068 = vpop.permute.xlu0 %1067
      %1069 = vrot.lane.b32.xlu0 %v988, 4
      %v1070 = vpop.permute.xlu0 %1069
      %1071 = vrot.lane.b32.xlu0 %v989, 4
      %v1072 = vpop.permute.xlu0 %1071
      %1073 = vrot.lane.b32.xlu0 %v990, 4
      %v1074 = vpop.permute.xlu0 %1073
      %1075 = vrot.lane.b32.xlu0 %v991, 4
      %v1076 = vpop.permute.xlu0 %1075
      %1077 = vrot.lane.b32.xlu0 %v992, 4
      %v1078 = vpop.permute.xlu0 %1077
      %1079 = vrot.lane.b32.xlu0 %v993, 4
      %v1080 = vpop.permute.xlu0 %1079
      %1081 = vrot.lane.b32.xlu0 %v994, 4
      %v1082 = vpop.permute.xlu0 %1081
      %1083 = vrot.lane.b32.xlu0 %v995, 4
      %v1084 = vpop.permute.xlu0 %1083
      %1085 = vrot.lane.b32.xlu0 %v996, 4
      %v1086 = vpop.permute.xlu0 %1085
      %1087 = vrot.lane.b32.xlu0 %v997, 4
      %v1088 = vpop.permute.xlu0 %1087
      %1089 = vrot.lane.b32.xlu0 %v998, 4
      %v1090 = vpop.permute.xlu0 %1089
      %1091 = vrot.lane.b32.xlu0 %v999, 4
      %v1092 = vpop.permute.xlu0 %1091
      %1093 = vrot.lane.b32.xlu0 %v1000, 4
      %v1094 = vpop.permute.xlu0 %1093
      %1095 = vrot.lane.b32.xlu0 %v1001, 4
      %v1096 = vpop.permute.xlu0 %1095
      %1097 = vrot.lane.b32.xlu0 %v1002, 4
      %v1098 = vpop.permute.xlu0 %1097
      %vm1115 = vcmask 31744
      %v1116 = vsel %vm1115, %v1020, %v1068
      %v1117 = vsel %vm1115, %v1022, %v1070
      %v1118 = vsel %vm1115, %v1024, %v1072
      %v1119 = vsel %vm1115, %v1026, %v1074
      %v1120 = vsel %vm1115, %v1028, %v1076
      %v1121 = vsel %vm1115, %v1030, %v1078
      %v1122 = vsel %vm1115, %v1032, %v1080
      %v1123 = vsel %vm1115, %v1034, %v1082
      %v1124 = vsel %vm1115, %v1036, %v1084
      %v1125 = vsel %vm1115, %v1038, %v1086
      %v1126 = vsel %vm1115, %v1040, %v1088
      %v1127 = vsel %vm1115, %v1042, %v1090
      %v1128 = vsel %vm1115, %v1044, %v1092
      %v1129 = vsel %vm1115, %v1046, %v1094
      %v1130 = vsel %vm1115, %v1048, %v1096
      %v1131 = vsel %vm1115, %v1050, %v1098
      %v1132 = vadd.f32 %v951, %v1116
      %v1133 = vadd.f32 %v952, %v1117
      %v1134 = vadd.f32 %v953, %v1118
      %v1135 = vadd.f32 %v954, %v1119
      %v1136 = vadd.f32 %v955, %v1120
      %v1137 = vadd.f32 %v956, %v1121
      %v1138 = vadd.f32 %v957, %v1122
      %v1139 = vadd.f32 %v958, %v1123
      %v1140 = vadd.f32 %v959, %v1124
      %v1141 = vadd.f32 %v960, %v1125
      %v1142 = vadd.f32 %v961, %v1126
      %v1143 = vadd.f32 %v962, %v1127
      %v1144 = vadd.f32 %v963, %v1128
      %v1145 = vadd.f32 %v964, %v1129
      %v1146 = vadd.f32 %v965, %v1130
      %v1147 = vadd.f32 %v966, %v1131
      %v1148 = vld [vmem:[%s4] sm:$0x1f]
      %vm1149 = vcmask 64512
      %v1150 = vsel %vm1149, %v1132, 0.0
      %1151 = vadd.xlane.f32.xlu0 %v1150
      %v1152 = vpop.xlane.xlu0 %1151
      %v1153 = vsel %vm1149, %v1133, 0.0
      %1154 = vadd.xlane.f32.xlu0 %v1153
      %v1155 = vpop.xlane.xlu0 %1154
      %v1156 = vsel %vm1149, %v1134, 0.0
      %1157 = vadd.xlane.f32.xlu0 %v1156
      %v1158 = vpop.xlane.xlu0 %1157
      %v1159 = vsel %vm1149, %v1135, 0.0
      %1160 = vadd.xlane.f32.xlu0 %v1159
      %v1161 = vpop.xlane.xlu0 %1160
      %v1162 = vsel %vm1149, %v1136, 0.0
      %1163 = vadd.xlane.f32.xlu0 %v1162
      %v1164 = vpop.xlane.xlu0 %1163
      %v1165 = vsel %vm1149, %v1137, 0.0
      %1166 = vadd.xlane.f32.xlu0 %v1165
      %v1167 = vpop.xlane.xlu0 %1166
      %v1168 = vsel %vm1149, %v1138, 0.0
      %1169 = vadd.xlane.f32.xlu0 %v1168
      %v1170 = vpop.xlane.xlu0 %1169
      %v1171 = vsel %vm1149, %v1139, 0.0
      %1172 = vadd.xlane.f32.xlu0 %v1171
      %v1173 = vpop.xlane.xlu0 %1172
      %v1174 = vsel %vm1149, %v1140, 0.0
      %1175 = vadd.xlane.f32.xlu0 %v1174
      %v1176 = vpop.xlane.xlu0 %1175
      %v1177 = vsel %vm1149, %v1141, 0.0
      %1178 = vadd.xlane.f32.xlu0 %v1177
      %v1179 = vpop.xlane.xlu0 %1178
      %v1180 = vsel %vm1149, %v1142, 0.0
      %1181 = vadd.xlane.f32.xlu0 %v1180
      %v1182 = vpop.xlane.xlu0 %1181
      %v1183 = vsel %vm1149, %v1143, 0.0
      %1184 = vadd.xlane.f32.xlu0 %v1183
      %v1185 = vpop.xlane.xlu0 %1184
      %v1186 = vsel %vm1149, %v1144, 0.0
      %1187 = vadd.xlane.f32.xlu0 %v1186
      %v1188 = vpop.xlane.xlu0 %1187
      %v1189 = vsel %vm1149, %v1145, 0.0
      %1190 = vadd.xlane.f32.xlu0 %v1189
      %v1191 = vpop.xlane.xlu0 %1190
      %v1192 = vsel %vm1149, %v1146, 0.0
      %1193 = vadd.xlane.f32.xlu0 %v1192
      %v1194 = vpop.xlane.xlu0 %1193
      %v1195 = vsel %vm1149, %v1147, 0.0
      %1196 = vadd.xlane.f32.xlu0 %v1195
      %v1197 = vpop.xlane.xlu0 %1196
      %v1198 = vrcp.pop 8.0
      %v1199 = vmul.f32 %v1152, %v1198
      %v1200 = vmul.f32 %v1155, %v1198
      %v1201 = vmul.f32 %v1158, %v1198
      %v1202 = vmul.f32 %v1161, %v1198
      %v1203 = vmul.f32 %v1164, %v1198
      %v1204 = vmul.f32 %v1167, %v1198
      %v1205 = vmul.f32 %v1170, %v1198
      %v1206 = vmul.f32 %v1173, %v1198
      %v1207 = vmul.f32 %v1176, %v1198
      %v1208 = vmul.f32 %v1179, %v1198
      %v1209 = vmul.f32 %v1182, %v1198
      %v1210 = vmul.f32 %v1185, %v1198
      %v1211 = vmul.f32 %v1188, %v1198
      %v1212 = vmul.f32 %v1191, %v1198
      %v1213 = vmul.f32 %v1194, %v1198
      %v1214 = vmul.f32 %v1197, %v1198
      %v1215 = vlaneseq
      %v1216 = vshrl.u32 %v1215, 7
      %v1217 = vsub.s32 0, %v1216
      %v1218 = vrot.slane %v1148, %v1217
      %v1219 = vmul.f32 %v1132, %v1218
      %v1220 = vmul.f32 %v1133, %v1218
      %v1221 = vmul.f32 %v1134, %v1218
      %v1222 = vmul.f32 %v1135, %v1218
      %v1223 = vmul.f32 %v1136, %v1218
      %v1224 = vmul.f32 %v1137, %v1218
      %v1225 = vmul.f32 %v1138, %v1218
      %v1226 = vmul.f32 %v1139, %v1218
      %v1227 = vmul.f32 %v1140, %v1218
      %v1228 = vmul.f32 %v1141, %v1218
      %v1229 = vmul.f32 %v1142, %v1218
      %v1230 = vmul.f32 %v1143, %v1218
      %v1231 = vmul.f32 %v1144, %v1218
      %v1232 = vmul.f32 %v1145, %v1218
      %v1233 = vmul.f32 %v1146, %v1218
      %v1234 = vmul.f32 %v1147, %v1218
      %v1235 = vsel %vm1149, %v1219, 0.0
      %1236 = vadd.xlane.f32.xlu0 %v1235
      %v1237 = vpop.xlane.xlu0 %1236
      %v1238 = vsel %vm1149, %v1220, 0.0
      %1239 = vadd.xlane.f32.xlu0 %v1238
      %v1240 = vpop.xlane.xlu0 %1239
      %v1241 = vsel %vm1149, %v1221, 0.0
      %1242 = vadd.xlane.f32.xlu0 %v1241
      %v1243 = vpop.xlane.xlu0 %1242
      %v1244 = vsel %vm1149, %v1222, 0.0
      %1245 = vadd.xlane.f32.xlu0 %v1244
      %v1246 = vpop.xlane.xlu0 %1245
      %v1247 = vsel %vm1149, %v1223, 0.0
      %1248 = vadd.xlane.f32.xlu0 %v1247
      %v1249 = vpop.xlane.xlu0 %1248
      %v1250 = vsel %vm1149, %v1224, 0.0
      %1251 = vadd.xlane.f32.xlu0 %v1250
      %v1252 = vpop.xlane.xlu0 %1251
      %v1253 = vsel %vm1149, %v1225, 0.0
      %1254 = vadd.xlane.f32.xlu0 %v1253
      %v1255 = vpop.xlane.xlu0 %1254
      %v1256 = vsel %vm1149, %v1226, 0.0
      %1257 = vadd.xlane.f32.xlu0 %v1256
      %v1258 = vpop.xlane.xlu0 %1257
      %v1259 = vsel %vm1149, %v1227, 0.0
      %1260 = vadd.xlane.f32.xlu0 %v1259
      %v1261 = vpop.xlane.xlu0 %1260
      %v1262 = vsel %vm1149, %v1228, 0.0
      %1263 = vadd.xlane.f32.xlu0 %v1262
      %v1264 = vpop.xlane.xlu0 %1263
      %v1265 = vsel %vm1149, %v1229, 0.0
      %1266 = vadd.xlane.f32.xlu0 %v1265
      %v1267 = vpop.xlane.xlu0 %1266
      %v1268 = vsel %vm1149, %v1230, 0.0
      %1269 = vadd.xlane.f32.xlu0 %v1268
      %v1270 = vpop.xlane.xlu0 %1269
      %v1271 = vsel %vm1149, %v1231, 0.0
      %1272 = vadd.xlane.f32.xlu0 %v1271
      %v1273 = vpop.xlane.xlu0 %1272
      %v1274 = vsel %vm1149, %v1232, 0.0
      %1275 = vadd.xlane.f32.xlu0 %v1274
      %v1276 = vpop.xlane.xlu0 %1275
      %v1277 = vsel %vm1149, %v1233, 0.0
      %1278 = vadd.xlane.f32.xlu0 %v1277
      %v1279 = vpop.xlane.xlu0 %1278
      %v1280 = vsel %vm1149, %v1234, 0.0
      %1281 = vadd.xlane.f32.xlu0 %v1280
      %v1282 = vpop.xlane.xlu0 %1281
      %v1283 = vmul.f32 %v1237, %v1198
      %v1284 = vmul.f32 %v1240, %v1198
      %v1285 = vmul.f32 %v1243, %v1198
      %v1286 = vmul.f32 %v1246, %v1198
      %v1287 = vmul.f32 %v1249, %v1198
      %v1288 = vmul.f32 %v1252, %v1198
      %v1289 = vmul.f32 %v1255, %v1198
      %v1290 = vmul.f32 %v1258, %v1198
      %v1291 = vmul.f32 %v1261, %v1198
      %v1292 = vmul.f32 %v1264, %v1198
      %v1293 = vmul.f32 %v1267, %v1198
      %v1294 = vmul.f32 %v1270, %v1198
      %v1295 = vmul.f32 %v1273, %v1198
      %v1296 = vmul.f32 %v1276, %v1198
      %v1297 = vmul.f32 %v1279, %v1198
      %v1298 = vmul.f32 %v1282, %v1198
      %v1299 = vmul.f32 %v1218, %v1283
      %v1300 = vmul.f32 %v1218, %v1284
      %v1301 = vmul.f32 %v1218, %v1285
      %v1302 = vmul.f32 %v1218, %v1286
      %v1303 = vmul.f32 %v1218, %v1287
      %v1304 = vmul.f32 %v1218, %v1288
      %v1305 = vmul.f32 %v1218, %v1289
      %v1306 = vmul.f32 %v1218, %v1290
      %v1307 = vmul.f32 %v1218, %v1291
      %v1308 = vmul.f32 %v1218, %v1292
      %v1309 = vmul.f32 %v1218, %v1293
      %v1310 = vmul.f32 %v1218, %v1294
      %v1311 = vmul.f32 %v1218, %v1295
      %v1312 = vmul.f32 %v1218, %v1296
      %v1313 = vmul.f32 %v1218, %v1297
      %v1314 = vmul.f32 %v1218, %v1298
      %v1315 = vadd.f32 %v1199, %v1299
      %v1316 = vadd.f32 %v1200, %v1300
      %v1317 = vadd.f32 %v1201, %v1301
      %v1318 = vadd.f32 %v1202, %v1302
      %v1319 = vadd.f32 %v1203, %v1303
      %v1320 = vadd.f32 %v1204, %v1304
      %v1321 = vadd.f32 %v1205, %v1305
      %v1322 = vadd.f32 %v1206, %v1306
      %v1323 = vadd.f32 %v1207, %v1307
      %v1324 = vadd.f32 %v1208, %v1308
      %v1325 = vadd.f32 %v1209, %v1309
      %v1326 = vadd.f32 %v1210, %v1310
      %v1327 = vadd.f32 %v1211, %v1311
      %v1328 = vadd.f32 %v1212, %v1312
      %v1329 = vadd.f32 %v1213, %v1313
      %v1330 = vadd.f32 %v1214, %v1314
      %v1331 = vsub.f32 %v1132, %v1315
      %v1332 = vsub.f32 %v1133, %v1316
      %v1333 = vsub.f32 %v1134, %v1317
      %v1334 = vsub.f32 %v1135, %v1318
      %v1335 = vsub.f32 %v1136, %v1319
      %v1336 = vsub.f32 %v1137, %v1320
      %v1337 = vsub.f32 %v1138, %v1321
      %v1338 = vsub.f32 %v1139, %v1322
      %v1339 = vsub.f32 %v1140, %v1323
      %v1340 = vsub.f32 %v1141, %v1324
      %v1341 = vsub.f32 %v1142, %v1325
      %v1342 = vsub.f32 %v1143, %v1326
      %v1343 = vsub.f32 %v1144, %v1327
      %v1344 = vsub.f32 %v1145, %v1328
      %v1345 = vsub.f32 %v1146, %v1329
      %v1346 = vsub.f32 %v1147, %v1330
      %v1347 = vmul.f32 %v1331, %v1331
      %v1348 = vmul.f32 %v1332, %v1332
      %v1349 = vmul.f32 %v1333, %v1333
      %v1350 = vmul.f32 %v1334, %v1334
      %v1351 = vmul.f32 %v1335, %v1335
      %v1352 = vmul.f32 %v1336, %v1336
      %v1353 = vmul.f32 %v1337, %v1337
      %v1354 = vmul.f32 %v1338, %v1338
      %v1355 = vmul.f32 %v1339, %v1339
      %v1356 = vmul.f32 %v1340, %v1340
      %v1357 = vmul.f32 %v1341, %v1341
      %v1358 = vmul.f32 %v1342, %v1342
      %v1359 = vmul.f32 %v1343, %v1343
      %v1360 = vmul.f32 %v1344, %v1344
      %v1361 = vmul.f32 %v1345, %v1345
      %v1362 = vmul.f32 %v1346, %v1346
      %v1363 = vsel %vm1149, %v1347, 0.0
      %1364 = vadd.xlane.f32.xlu0 %v1363
      %v1365 = vpop.xlane.xlu0 %1364
      %v1366 = vsel %vm1149, %v1348, 0.0
      %1367 = vadd.xlane.f32.xlu0 %v1366
      %v1368 = vpop.xlane.xlu0 %1367
      %v1369 = vsel %vm1149, %v1349, 0.0
      %1370 = vadd.xlane.f32.xlu0 %v1369
      %v1371 = vpop.xlane.xlu0 %1370
      %v1372 = vsel %vm1149, %v1350, 0.0
      %1373 = vadd.xlane.f32.xlu0 %v1372
      %v1374 = vpop.xlane.xlu0 %1373
      %v1375 = vsel %vm1149, %v1351, 0.0
      %1376 = vadd.xlane.f32.xlu0 %v1375
      %v1377 = vpop.xlane.xlu0 %1376
      %v1378 = vsel %vm1149, %v1352, 0.0
      %1379 = vadd.xlane.f32.xlu0 %v1378
      %v1380 = vpop.xlane.xlu0 %1379
      %v1381 = vsel %vm1149, %v1353, 0.0
      %1382 = vadd.xlane.f32.xlu0 %v1381
      %v1383 = vpop.xlane.xlu0 %1382
      %v1384 = vsel %vm1149, %v1354, 0.0
      %1385 = vadd.xlane.f32.xlu0 %v1384
      %v1386 = vpop.xlane.xlu0 %1385
      %v1387 = vsel %vm1149, %v1355, 0.0
      %1388 = vadd.xlane.f32.xlu0 %v1387
      %v1389 = vpop.xlane.xlu0 %1388
      %v1390 = vsel %vm1149, %v1356, 0.0
      %1391 = vadd.xlane.f32.xlu0 %v1390
      %v1392 = vpop.xlane.xlu0 %1391
      %v1393 = vsel %vm1149, %v1357, 0.0
      %1394 = vadd.xlane.f32.xlu0 %v1393
      %v1395 = vpop.xlane.xlu0 %1394
      %v1396 = vsel %vm1149, %v1358, 0.0
      %1397 = vadd.xlane.f32.xlu0 %v1396
      %v1398 = vpop.xlane.xlu0 %1397
      %v1399 = vsel %vm1149, %v1359, 0.0
      %1400 = vadd.xlane.f32.xlu0 %v1399
      %v1401 = vpop.xlane.xlu0 %1400
      %v1402 = vsel %vm1149, %v1360, 0.0
      %1403 = vadd.xlane.f32.xlu0 %v1402
      %v1404 = vpop.xlane.xlu0 %1403
      %v1405 = vsel %vm1149, %v1361, 0.0
      %1406 = vadd.xlane.f32.xlu0 %v1405
      %v1407 = vpop.xlane.xlu0 %1406
      %v1408 = vsel %vm1149, %v1362, 0.0
      %1409 = vadd.xlane.f32.xlu0 %v1408
      %v1410 = vpop.xlane.xlu0 %1409
      %v1411 = vmul.f32 %v1365, %v1198
      %v1412 = vmul.f32 %v1368, %v1198
      %v1413 = vmul.f32 %v1371, %v1198
      %v1414 = vmul.f32 %v1374, %v1198
      %v1415 = vmul.f32 %v1377, %v1198
      %v1416 = vmul.f32 %v1380, %v1198
      %v1417 = vmul.f32 %v1383, %v1198
      %v1418 = vmul.f32 %v1386, %v1198
      %v1419 = vmul.f32 %v1389, %v1198
      %v1420 = vmul.f32 %v1392, %v1198
      %v1421 = vmul.f32 %v1395, %v1198
      %v1422 = vmul.f32 %v1398, %v1198
      %v1423 = vmul.f32 %v1401, %v1198
      %v1424 = vmul.f32 %v1404, %v1198
      %v1425 = vmul.f32 %v1407, %v1198
      %v1426 = vmul.f32 %v1410, %v1198
      %v1427 = vmul.f32 %v1411, 2.0
      %v1428 = vmul.f32 %v1412, 2.0
      %v1429 = vmul.f32 %v1413, 2.0
      %v1430 = vmul.f32 %v1414, 2.0
      %v1431 = vmul.f32 %v1415, 2.0
      %v1432 = vmul.f32 %v1416, 2.0
      %v1433 = vmul.f32 %v1417, 2.0
      %v1434 = vmul.f32 %v1418, 2.0
      %v1435 = vmul.f32 %v1419, 2.0
      %v1436 = vmul.f32 %v1420, 2.0
      %v1437 = vmul.f32 %v1421, 2.0
      %v1438 = vmul.f32 %v1422, 2.0
      %v1439 = vmul.f32 %v1423, 2.0
      %v1440 = vmul.f32 %v1424, 2.0
      %v1441 = vmul.f32 %v1425, 2.0
      %v1442 = vmul.f32 %v1426, 2.0
      %v1443 = vadd.f32 %v1427, 1e-05
      %v1444 = vadd.f32 %v1428, 1e-05
      %v1445 = vadd.f32 %v1429, 1e-05
      %v1446 = vadd.f32 %v1430, 1e-05
      %v1447 = vadd.f32 %v1431, 1e-05
      %v1448 = vadd.f32 %v1432, 1e-05
      %v1449 = vadd.f32 %v1433, 1e-05
      %v1450 = vadd.f32 %v1434, 1e-05
      %v1451 = vadd.f32 %v1435, 1e-05
      %v1452 = vadd.f32 %v1436, 1e-05
      %v1453 = vadd.f32 %v1437, 1e-05
      %v1454 = vadd.f32 %v1438, 1e-05
      %v1455 = vadd.f32 %v1439, 1e-05
      %v1456 = vadd.f32 %v1440, 1e-05
      %v1457 = vadd.f32 %v1441, 1e-05
      %v1458 = vadd.f32 %v1442, 1e-05
      %v1459 = vrsqrt.pop %v1443
      %v1460 = vrsqrt.pop %v1444
      %v1461 = vrsqrt.pop %v1445
      %v1462 = vrsqrt.pop %v1446
      %v1463 = vrsqrt.pop %v1447
      %v1464 = vrsqrt.pop %v1448
      %v1465 = vrsqrt.pop %v1449
      %v1466 = vrsqrt.pop %v1450
      %v1467 = vrsqrt.pop %v1451
      %v1468 = vrsqrt.pop %v1452
      %v1469 = vrsqrt.pop %v1453
      %v1470 = vrsqrt.pop %v1454
      %v1471 = vrsqrt.pop %v1455
      %v1472 = vrsqrt.pop %v1456
      %v1473 = vrsqrt.pop %v1457
      %v1474 = vrsqrt.pop %v1458
      %v1475 = vmul.f32 %v1331, %v1459
      %v1476 = vmul.f32 %v1332, %v1460
      %v1477 = vmul.f32 %v1333, %v1461
      %v1478 = vmul.f32 %v1334, %v1462
      %v1479 = vmul.f32 %v1335, %v1463
      %v1480 = vmul.f32 %v1336, %v1464
      %v1481 = vmul.f32 %v1337, %v1465
      %v1482 = vmul.f32 %v1338, %v1466
      %v1483 = vmul.f32 %v1339, %v1467
      %v1484 = vmul.f32 %v1340, %v1468
      %v1485 = vmul.f32 %v1341, %v1469
      %v1486 = vmul.f32 %v1342, %v1470
      %v1487 = vmul.f32 %v1343, %v1471
      %v1488 = vmul.f32 %v1344, %v1472
      %v1489 = vmul.f32 %v1345, %v1473
      %v1490 = vmul.f32 %v1346, %v1474
      %v1491 = vlaneseq
      %v1492 = vshrl.u32 %v1491, 7
      %v1493 = vsub.s32 1, %v1492
      %v1494 = vrot.slane %v1148, %v1493
      %v1495 = vmul.f32 %v1475, %v1494
      %v1496 = vmul.f32 %v1476, %v1494
      %v1497 = vmul.f32 %v1477, %v1494
      %v1498 = vmul.f32 %v1478, %v1494
      %v1499 = vmul.f32 %v1479, %v1494
      %v1500 = vmul.f32 %v1480, %v1494
      %v1501 = vmul.f32 %v1481, %v1494
      %v1502 = vmul.f32 %v1482, %v1494
      %v1503 = vmul.f32 %v1483, %v1494
      %v1504 = vmul.f32 %v1484, %v1494
      %v1505 = vmul.f32 %v1485, %v1494
      %v1506 = vmul.f32 %v1486, %v1494
      %v1507 = vmul.f32 %v1487, %v1494
      %v1508 = vmul.f32 %v1488, %v1494
      %v1509 = vmul.f32 %v1489, %v1494
      %v1510 = vmul.f32 %v1490, %v1494
      %v1511 = vlaneseq
      %v1512 = vshrl.u32 %v1511, 7
      %v1513 = vsub.s32 2, %v1512
      %v1514 = vrot.slane %v1148, %v1513
      %v1515 = vadd.f32 %v1495, %v1514
      %v1516 = vadd.f32 %v1496, %v1514
      %v1517 = vadd.f32 %v1497, %v1514
      %v1518 = vadd.f32 %v1498, %v1514
      %v1519 = vadd.f32 %v1499, %v1514
      %v1520 = vadd.f32 %v1500, %v1514
      %v1521 = vadd.f32 %v1501, %v1514
      %v1522 = vadd.f32 %v1502, %v1514
      %v1523 = vadd.f32 %v1503, %v1514
      %v1524 = vadd.f32 %v1504, %v1514
      %v1525 = vadd.f32 %v1505, %v1514
      %v1526 = vadd.f32 %v1506, %v1514
      %v1527 = vadd.f32 %v1507, %v1514
      %v1528 = vadd.f32 %v1508, %v1514
      %v1529 = vadd.f32 %v1509, %v1514
      %v1530 = vadd.f32 %v1510, %v1514
      %v1531 = vpack.c.bf16 %v1516, %v1515
      %v1532 = vpack.c.bf16 %v1518, %v1517
      %v1533 = vpack.c.bf16 %v1520, %v1519
      %v1534 = vpack.c.bf16 %v1522, %v1521
      %v1535 = vpack.c.bf16 %v1524, %v1523
      %v1536 = vpack.c.bf16 %v1526, %v1525
      %v1537 = vpack.c.bf16 %v1528, %v1527
      %v1538 = vpack.c.bf16 %v1530, %v1529
      %v1539 = vld [vmem:[%s2] sm:$0xf]
      %v1540 = vld [vmem:[%s5] sm:$0x1]
      %v1542 = vlaneseq
      %v1543 = vshrl.u32 %v1542, 7
      %v1544 = vsub.s32 0, %v1543
      %v1545 = vrot.slane %v1540, %v1544
      %v1548 = vsel %vm1149, %v1531, 0
      %v1551 = vsel %vm1149, %v1532, 0
      %v1554 = vsel %vm1149, %v1533, 0
      %v1557 = vsel %vm1149, %v1534, 0
      %v1560 = vsel %vm1149, %v1535, 0
      %v1563 = vsel %vm1149, %v1536, 0
      %v1566 = vsel %vm1149, %v1537, 0
      %v1569 = vsel %vm1149, %v1538, 0
      %vm1571 = vcmask 1043456
      %v1573 = vsel %vm1571, %v1539, 0
      %1575 = vmatprep.subr.bf16.mxu0 0
      %1576 = vmatpush1.bf16.msra.mxu0 %v1573
      %1577 = vmatprep.subr.bf16.mxu0 0
      %1578 = vmatpush1.bf16.msra.mxu0 0
      %1579 = vmatprep.subr.bf16.mxu0 0
      %1580 = vmatpush1.bf16.msra.mxu0 0
      %1581 = vmatprep.subr.bf16.mxu0 0
      %1582 = vmatpush1.bf16.msra.mxu0 0
      %1583 = vmatprep.subr.bf16.mxu0 0
      %1584 = vmatpush1.bf16.msra.mxu0 0
      %1585 = vmatprep.subr.bf16.mxu0 0
      %1586 = vmatpush1.bf16.msra.mxu0 0
      %1587 = vmatprep.subr.bf16.mxu0 0
      %1588 = vmatpush1.bf16.msra.mxu0 0
      %1589 = vmatprep.subr.bf16.mxu0 0
      %1590 = vmatpush1.bf16.msra.mxu0 0
      %1591 = vmatprep.subr.bf16.mxu0 0
      %1592 = vmatpush1.bf16.msra.mxu0 0
      %1593 = vmatprep.subr.bf16.mxu0 0
      %1594 = vmatpush1.bf16.msra.mxu0 0
      %1595 = vmatprep.subr.bf16.mxu0 0
      %1596 = vmatpush1.bf16.msra.mxu0 0
      %1597 = vmatprep.subr.bf16.mxu0 0
      %1598 = vmatpush1.bf16.msra.mxu0 0
      %1599 = vmatprep.subr.bf16.mxu0 0
      %1600 = vmatpush1.bf16.msra.mxu0 0
      %1601 = vmatprep.subr.bf16.mxu0 0
      %1602 = vmatpush1.bf16.msra.mxu0 0
      %1603 = vmatprep.subr.bf16.mxu0 0
      %1604 = vmatpush1.bf16.msra.mxu0 0
      %1605 = vmatprep.subr.bf16.mxu0 0
      %1606 = vmatpush1.bf16.msra.mxu0 0
      %1607 = vmatprep.mubr.bf16.mxu0 0
      %1608 = vmatmul.mubr.bf16.gmra.mrb[0].mxu0 %v1548
      %v1609 = vpop.f32.mrb[0].mxu0
      %v1610 = vadd.f32 %v1545, %v1609
      %v1611 = vpop.f32.mrb[0].mxu0
      %v1612 = vpop.f32.mrb[0].mxu0
      %v1613 = vadd.f32 %v1545, %v1612
      %v1614 = vpop.f32.mrb[0].mxu0
      %1615 = vmatprep.mubr.bf16.mxu0 0
      %1616 = vmatmul.mubr.bf16.gmra.mrb[0].mxu0 %v1551
      %v1617 = vpop.f32.mrb[0].mxu0
      %v1618 = vadd.f32 %v1545, %v1617
      %v1619 = vpop.f32.mrb[0].mxu0
      %v1620 = vpop.f32.mrb[0].mxu0
      %v1621 = vadd.f32 %v1545, %v1620
      %v1622 = vpop.f32.mrb[0].mxu0
      %1623 = vmatprep.mubr.bf16.mxu0 0
      %1624 = vmatmul.mubr.bf16.gmra.mrb[0].mxu0 %v1554
      %v1625 = vpop.f32.mrb[0].mxu0
      %v1626 = vadd.f32 %v1545, %v1625
      %v1627 = vpop.f32.mrb[0].mxu0
      %v1628 = vpop.f32.mrb[0].mxu0
      %v1629 = vadd.f32 %v1545, %v1628
      %v1630 = vpop.f32.mrb[0].mxu0
      %1631 = vmatprep.mubr.bf16.mxu0 0
      %1632 = vmatmul.mubr.bf16.gmra.mrb[0].mxu0 %v1557
      %v1633 = vpop.f32.mrb[0].mxu0
      %v1634 = vadd.f32 %v1545, %v1633
      %v1635 = vpop.f32.mrb[0].mxu0
      %v1636 = vpop.f32.mrb[0].mxu0
      %v1637 = vadd.f32 %v1545, %v1636
      %v1638 = vpop.f32.mrb[0].mxu0
      %1639 = vmatprep.mubr.bf16.mxu0 0
      %1640 = vmatmul.mubr.bf16.gmra.mrb[0].mxu0 %v1560
      %v1641 = vpop.f32.mrb[0].mxu0
      %v1642 = vadd.f32 %v1545, %v1641
      %v1643 = vpop.f32.mrb[0].mxu0
      %v1644 = vpop.f32.mrb[0].mxu0
      %v1645 = vadd.f32 %v1545, %v1644
      %v1646 = vpop.f32.mrb[0].mxu0
      %1647 = vmatprep.mubr.bf16.mxu0 0
      %1648 = vmatmul.mubr.bf16.gmra.mrb[0].mxu0 %v1563
      %v1649 = vpop.f32.mrb[0].mxu0
      %v1650 = vadd.f32 %v1545, %v1649
      %v1651 = vpop.f32.mrb[0].mxu0
      %v1652 = vpop.f32.mrb[0].mxu0
      %v1653 = vadd.f32 %v1545, %v1652
      %v1654 = vpop.f32.mrb[0].mxu0
      %1655 = vmatprep.mubr.bf16.mxu0 0
      %1656 = vmatmul.mubr.bf16.gmra.mrb[0].mxu0 %v1566
      %v1657 = vpop.f32.mrb[0].mxu0
      %v1658 = vadd.f32 %v1545, %v1657
      %v1659 = vpop.f32.mrb[0].mxu0
      %v1660 = vpop.f32.mrb[0].mxu0
      %v1661 = vadd.f32 %v1545, %v1660
      %v1662 = vpop.f32.mrb[0].mxu0
      %1663 = vmatprep.mubr.bf16.mxu0 0
      %1664 = vmatmul.mubr.bf16.gmra.mrb[0].mxu0 %v1569
      %v1665 = vpop.f32.mrb[0].mxu0
      %v1666 = vadd.f32 %v1545, %v1665
      %v1667 = vpop.f32.mrb[0].mxu0
      %v1668 = vpop.f32.mrb[0].mxu0
      %v1669 = vadd.f32 %v1545, %v1668
      %v1670 = vpop.f32.mrb[0].mxu0
      %1671 = vdwg.mxu0
      %v1672 = vmul.f32 %v1610, 0.5
      %v1673 = vmul.f32 %v1613, 0.5
      %v1674 = vmul.f32 %v1618, 0.5
      %v1675 = vmul.f32 %v1621, 0.5
      %v1676 = vmul.f32 %v1626, 0.5
      %v1677 = vmul.f32 %v1629, 0.5
      %v1678 = vmul.f32 %v1634, 0.5
      %v1679 = vmul.f32 %v1637, 0.5
      %v1680 = vmul.f32 %v1642, 0.5
      %v1681 = vmul.f32 %v1645, 0.5
      %v1682 = vmul.f32 %v1650, 0.5
      %v1683 = vmul.f32 %v1653, 0.5
      %v1684 = vmul.f32 %v1658, 0.5
      %v1685 = vmul.f32 %v1661, 0.5
      %v1686 = vmul.f32 %v1666, 0.5
      %v1687 = vmul.f32 %v1669, 0.5
      %v1688 = vmul.f32 %v1610, 0.044715
      %v1689 = vmul.f32 %v1613, 0.044715
      %v1690 = vmul.f32 %v1618, 0.044715
      %v1691 = vmul.f32 %v1621, 0.044715
      %v1692 = vmul.f32 %v1626, 0.044715
      %v1693 = vmul.f32 %v1629, 0.044715
      %v1694 = vmul.f32 %v1634, 0.044715
      %v1695 = vmul.f32 %v1637, 0.044715
      %v1696 = vmul.f32 %v1642, 0.044715
      %v1697 = vmul.f32 %v1645, 0.044715
      %v1698 = vmul.f32 %v1650, 0.044715
      %v1699 = vmul.f32 %v1653, 0.044715
      %v1700 = vmul.f32 %v1658, 0.044715
      %v1701 = vmul.f32 %v1661, 0.044715
      %v1702 = vmul.f32 %v1666, 0.044715
      %v1703 = vmul.f32 %v1669, 0.044715
      %v1704 = vmul.f32 %v1688, %v1610
      %v1705 = vmul.f32 %v1689, %v1613
      %v1706 = vmul.f32 %v1690, %v1618
      %v1707 = vmul.f32 %v1691, %v1621
      %v1708 = vmul.f32 %v1692, %v1626
      %v1709 = vmul.f32 %v1693, %v1629
      %v1710 = vmul.f32 %v1694, %v1634
      %v1711 = vmul.f32 %v1695, %v1637
      %v1712 = vmul.f32 %v1696, %v1642
      %v1713 = vmul.f32 %v1697, %v1645
      %v1714 = vmul.f32 %v1698, %v1650
      %v1715 = vmul.f32 %v1699, %v1653
      %v1716 = vmul.f32 %v1700, %v1658
      %v1717 = vmul.f32 %v1701, %v1661
      %v1718 = vmul.f32 %v1702, %v1666
      %v1719 = vmul.f32 %v1703, %v1669
      %v1720 = vmul.f32 %v1704, %v1610
      %v1721 = vmul.f32 %v1705, %v1613
      %v1722 = vmul.f32 %v1706, %v1618
      %v1723 = vmul.f32 %v1707, %v1621
      %v1724 = vmul.f32 %v1708, %v1626
      %v1725 = vmul.f32 %v1709, %v1629
      %v1726 = vmul.f32 %v1710, %v1634
      %v1727 = vmul.f32 %v1711, %v1637
      %v1728 = vmul.f32 %v1712, %v1642
      %v1729 = vmul.f32 %v1713, %v1645
      %v1730 = vmul.f32 %v1714, %v1650
      %v1731 = vmul.f32 %v1715, %v1653
      %v1732 = vmul.f32 %v1716, %v1658
      %v1733 = vmul.f32 %v1717, %v1661
      %v1734 = vmul.f32 %v1718, %v1666
      %v1735 = vmul.f32 %v1719, %v1669
      %v1736 = vadd.f32 %v1610, %v1720
      %v1737 = vadd.f32 %v1613, %v1721
      %v1738 = vadd.f32 %v1618, %v1722
      %v1739 = vadd.f32 %v1621, %v1723
      %v1740 = vadd.f32 %v1626, %v1724
      %v1741 = vadd.f32 %v1629, %v1725
      %v1742 = vadd.f32 %v1634, %v1726
      %v1743 = vadd.f32 %v1637, %v1727
      %v1744 = vadd.f32 %v1642, %v1728
      %v1745 = vadd.f32 %v1645, %v1729
      %v1746 = vadd.f32 %v1650, %v1730
      %v1747 = vadd.f32 %v1653, %v1731
      %v1748 = vadd.f32 %v1658, %v1732
      %v1749 = vadd.f32 %v1661, %v1733
      %v1750 = vadd.f32 %v1666, %v1734
      %v1751 = vadd.f32 %v1669, %v1735
      %v1752 = vmul.f32 %v1736, 0.7978846
      %v1753 = vmul.f32 %v1737, 0.7978846
      %v1754 = vmul.f32 %v1738, 0.7978846
      %v1755 = vmul.f32 %v1739, 0.7978846
      %v1756 = vmul.f32 %v1740, 0.7978846
      %v1757 = vmul.f32 %v1741, 0.7978846
      %v1758 = vmul.f32 %v1742, 0.7978846
      %v1759 = vmul.f32 %v1743, 0.7978846
      %v1760 = vmul.f32 %v1744, 0.7978846
      %v1761 = vmul.f32 %v1745, 0.7978846
      %v1762 = vmul.f32 %v1746, 0.7978846
      %v1763 = vmul.f32 %v1747, 0.7978846
      %v1764 = vmul.f32 %v1748, 0.7978846
      %v1765 = vmul.f32 %v1749, 0.7978846
      %v1766 = vmul.f32 %v1750, 0.7978846
      %v1767 = vmul.f32 %v1751, 0.7978846
      %v1768 = vtanh.pop %v1752
      %v1769 = vtanh.pop %v1753
      %v1770 = vtanh.pop %v1754
      %v1771 = vtanh.pop %v1755
      %v1772 = vtanh.pop %v1756
      %v1773 = vtanh.pop %v1757
      %v1774 = vtanh.pop %v1758
      %v1775 = vtanh.pop %v1759
      %v1776 = vtanh.pop %v1760
      %v1777 = vtanh.pop %v1761
      %v1778 = vtanh.pop %v1762
      %v1779 = vtanh.pop %v1763
      %v1780 = vtanh.pop %v1764
      %v1781 = vtanh.pop %v1765
      %v1782 = vtanh.pop %v1766
      %v1783 = vtanh.pop %v1767
      %v1784 = vadd.f32 %v1768, 1.0
      %v1785 = vadd.f32 %v1769, 1.0
      %v1786 = vadd.f32 %v1770, 1.0
      %v1787 = vadd.f32 %v1771, 1.0
      %v1788 = vadd.f32 %v1772, 1.0
      %v1789 = vadd.f32 %v1773, 1.0
      %v1790 = vadd.f32 %v1774, 1.0
      %v1791 = vadd.f32 %v1775, 1.0
      %v1792 = vadd.f32 %v1776, 1.0
      %v1793 = vadd.f32 %v1777, 1.0
      %v1794 = vadd.f32 %v1778, 1.0
      %v1795 = vadd.f32 %v1779, 1.0
      %v1796 = vadd.f32 %v1780, 1.0
      %v1797 = vadd.f32 %v1781, 1.0
      %v1798 = vadd.f32 %v1782, 1.0
      %v1799 = vadd.f32 %v1783, 1.0
      %v1800 = vmul.f32 %v1672, %v1784
      %v1801 = vmul.f32 %v1673, %v1785
      %v1802 = vmul.f32 %v1674, %v1786
      %v1803 = vmul.f32 %v1675, %v1787
      %v1804 = vmul.f32 %v1676, %v1788
      %v1805 = vmul.f32 %v1677, %v1789
      %v1806 = vmul.f32 %v1678, %v1790
      %v1807 = vmul.f32 %v1679, %v1791
      %v1808 = vmul.f32 %v1680, %v1792
      %v1809 = vmul.f32 %v1681, %v1793
      %v1810 = vmul.f32 %v1682, %v1794
      %v1811 = vmul.f32 %v1683, %v1795
      %v1812 = vmul.f32 %v1684, %v1796
      %v1813 = vmul.f32 %v1685, %v1797
      %v1814 = vmul.f32 %v1686, %v1798
      %v1815 = vmul.f32 %v1687, %v1799
      %v1816 = vpack.c.bf16 %v1801, %v1800
      %v1817 = vpack.c.bf16 %v1803, %v1802
      %v1818 = vpack.c.bf16 %v1805, %v1804
      %v1819 = vpack.c.bf16 %v1807, %v1806
      %v1820 = vpack.c.bf16 %v1809, %v1808
      %v1821 = vpack.c.bf16 %v1811, %v1810
      %v1822 = vpack.c.bf16 %v1813, %v1812
      %v1823 = vpack.c.bf16 %v1815, %v1814
      %v1824 = vld [vmem:[%s3] sm:$0xf]
      %v1825 = vld [vmem:[%s3 + $0x4] sm:$0xf]
      %v1826 = vlaneseq
      %v1827 = vshrl.u32 %v1826, 7
      %v1828 = vsub.s32 4, %v1827
      %v1829 = vrot.slane %v1148, %v1828
      %v1832 = vunpack.c.l.b16 %v1824
      %v1833 = vunpack.c.l.b16 %v1825
      %v1834 = vpack.c.b16 %v1833, %v1832
      %vm1836 = vcmask 130048
      %v1838 = vsel %vm1836, %v1816, 0
      %v1841 = vsel %vm1836, %v1817, 0
      %v1844 = vsel %vm1836, %v1818, 0
      %v1847 = vsel %vm1836, %v1819, 0
      %v1850 = vsel %vm1836, %v1820, 0
      %v1853 = vsel %vm1836, %v1821, 0
      %v1856 = vsel %vm1836, %v1822, 0
      %v1859 = vsel %vm1836, %v1823, 0
      %1861 = vmatprep.subr.bf16.mxu0 0
      %1862 = vmatpush1.bf16.msra.mxu0 %v1834
      %1863 = vmatprep.subr.bf16.mxu0 0
      %1864 = vmatpush1.bf16.msra.mxu0 0
      %1865 = vmatprep.subr.bf16.mxu0 0
      %1866 = vmatpush1.bf16.msra.mxu0 0
      %1867 = vmatprep.subr.bf16.mxu0 0
      %1868 = vmatpush1.bf16.msra.mxu0 0
      %1869 = vmatprep.subr.bf16.mxu0 0
      %1870 = vmatpush1.bf16.msra.mxu0 0
      %1871 = vmatprep.subr.bf16.mxu0 0
      %1872 = vmatpush1.bf16.msra.mxu0 0
      %1873 = vmatprep.subr.bf16.mxu0 0
      %1874 = vmatpush1.bf16.msra.mxu0 0
      %1875 = vmatprep.subr.bf16.mxu0 0
      %1876 = vmatpush1.bf16.msra.mxu0 0
      %1877 = vmatprep.subr.bf16.mxu0 0
      %1878 = vmatpush1.bf16.msra.mxu0 0
      %1879 = vmatprep.subr.bf16.mxu0 0
      %1880 = vmatpush1.bf16.msra.mxu0 0
      %1881 = vmatprep.subr.bf16.mxu0 0
      %1882 = vmatpush1.bf16.msra.mxu0 0
      %1883 = vmatprep.subr.bf16.mxu0 0
      %1884 = vmatpush1.bf16.msra.mxu0 0
      %1885 = vmatprep.subr.bf16.mxu0 0
      %1886 = vmatpush1.bf16.msra.mxu0 0
      %1887 = vmatprep.subr.bf16.mxu0 0
      %1888 = vmatpush1.bf16.msra.mxu0 0
      %1889 = vmatprep.subr.bf16.mxu0 0
      %1890 = vmatpush1.bf16.msra.mxu0 0
      %1891 = vmatprep.subr.bf16.mxu0 0
      %1892 = vmatpush1.bf16.msra.mxu0 0
      %1893 = vmatprep.mubr.bf16.mxu0 0
      %1894 = vmatmul.mubr.bf16.gmra.mrb[0].mxu0 %v1838
      %v1895 = vpop.f32.mrb[0].mxu0
      %v1896 = vadd.f32 %v1829, %v1895
      %v1897 = vpop.f32.mrb[0].mxu0
      %v1898 = vpop.f32.mrb[0].mxu0
      %v1899 = vadd.f32 %v1829, %v1898
      %v1900 = vpop.f32.mrb[0].mxu0
      %1901 = vmatprep.mubr.bf16.mxu0 0
      %1902 = vmatmul.mubr.bf16.gmra.mrb[0].mxu0 %v1841
      %v1903 = vpop.f32.mrb[0].mxu0
      %v1904 = vadd.f32 %v1829, %v1903
      %v1905 = vpop.f32.mrb[0].mxu0
      %v1906 = vpop.f32.mrb[0].mxu0
      %v1907 = vadd.f32 %v1829, %v1906
      %v1908 = vpop.f32.mrb[0].mxu0
      %1909 = vmatprep.mubr.bf16.mxu0 0
      %1910 = vmatmul.mubr.bf16.gmra.mrb[0].mxu0 %v1844
      %v1911 = vpop.f32.mrb[0].mxu0
      %v1912 = vadd.f32 %v1829, %v1911
      %v1913 = vpop.f32.mrb[0].mxu0
      %v1914 = vpop.f32.mrb[0].mxu0
      %v1915 = vadd.f32 %v1829, %v1914
      %v1916 = vpop.f32.mrb[0].mxu0
      %1917 = vmatprep.mubr.bf16.mxu0 0
      %1918 = vmatmul.mubr.bf16.gmra.mrb[0].mxu0 %v1847
      %v1919 = vpop.f32.mrb[0].mxu0
      %v1920 = vadd.f32 %v1829, %v1919
      %v1921 = vpop.f32.mrb[0].mxu0
      %v1922 = vpop.f32.mrb[0].mxu0
      %v1923 = vadd.f32 %v1829, %v1922
      %v1924 = vpop.f32.mrb[0].mxu0
      %1925 = vmatprep.mubr.bf16.mxu0 0
      %1926 = vmatmul.mubr.bf16.gmra.mrb[0].mxu0 %v1850
      %v1927 = vpop.f32.mrb[0].mxu0
      %v1928 = vadd.f32 %v1829, %v1927
      %v1929 = vpop.f32.mrb[0].mxu0
      %v1930 = vpop.f32.mrb[0].mxu0
      %v1931 = vadd.f32 %v1829, %v1930
      %v1932 = vpop.f32.mrb[0].mxu0
      %1933 = vmatprep.mubr.bf16.mxu0 0
      %1934 = vmatmul.mubr.bf16.gmra.mrb[0].mxu0 %v1853
      %v1935 = vpop.f32.mrb[0].mxu0
      %v1936 = vadd.f32 %v1829, %v1935
      %v1937 = vpop.f32.mrb[0].mxu0
      %v1938 = vpop.f32.mrb[0].mxu0
      %v1939 = vadd.f32 %v1829, %v1938
      %v1940 = vpop.f32.mrb[0].mxu0
      %1941 = vmatprep.mubr.bf16.mxu0 0
      %1942 = vmatmul.mubr.bf16.gmra.mrb[0].mxu0 %v1856
      %v1943 = vpop.f32.mrb[0].mxu0
      %v1944 = vadd.f32 %v1829, %v1943
      %v1945 = vpop.f32.mrb[0].mxu0
      %v1946 = vpop.f32.mrb[0].mxu0
      %v1947 = vadd.f32 %v1829, %v1946
      %v1948 = vpop.f32.mrb[0].mxu0
      %1949 = vmatprep.mubr.bf16.mxu0 0
      %1950 = vmatmul.mubr.bf16.gmra.mrb[0].mxu0 %v1859
      %v1951 = vpop.f32.mrb[0].mxu0
      %v1952 = vadd.f32 %v1829, %v1951
      %v1953 = vpop.f32.mrb[0].mxu0
      %v1954 = vpop.f32.mrb[0].mxu0
      %v1955 = vadd.f32 %v1829, %v1954
      %v1956 = vpop.f32.mrb[0].mxu0
      %1957 = vdwg.mxu0
      %v1958 = vlaneseq
      %v1959 = vshrl.u32 %v1958, 7
      %v1960 = vsub.s32 3, %v1959
      %v1961 = vrot.slane %v1148, %v1960
      %v1962 = vmul.f32 %v1896, %v1961
      %v1963 = vmul.f32 %v1899, %v1961
      %v1964 = vmul.f32 %v1904, %v1961
      %v1965 = vmul.f32 %v1907, %v1961
      %v1966 = vmul.f32 %v1912, %v1961
      %v1967 = vmul.f32 %v1915, %v1961
      %v1968 = vmul.f32 %v1920, %v1961
      %v1969 = vmul.f32 %v1923, %v1961
      %v1970 = vmul.f32 %v1928, %v1961
      %v1971 = vmul.f32 %v1931, %v1961
      %v1972 = vmul.f32 %v1936, %v1961
      %v1973 = vmul.f32 %v1939, %v1961
      %v1974 = vmul.f32 %v1944, %v1961
      %v1975 = vmul.f32 %v1947, %v1961
      %v1976 = vmul.f32 %v1952, %v1961
      %v1977 = vmul.f32 %v1955, %v1961
      %v1978 = vadd.f32 %v1962, %v317
      %v1979 = vadd.f32 %v1963, %v318
      %v1980 = vadd.f32 %v1964, %v319
      %v1981 = vadd.f32 %v1965, %v320
      %v1982 = vadd.f32 %v1966, %v321
      %v1983 = vadd.f32 %v1967, %v322
      %v1984 = vadd.f32 %v1968, %v323
      %v1985 = vadd.f32 %v1969, %v324
      %v1986 = vadd.f32 %v1970, %v325
      %v1987 = vadd.f32 %v1971, %v326
      %v1988 = vadd.f32 %v1972, %v327
      %v1989 = vadd.f32 %v1973, %v328
      %v1990 = vadd.f32 %v1974, %v329
      %v1991 = vadd.f32 %v1975, %v330
      %v1992 = vadd.f32 %v1976, %v331
      %v1993 = vadd.f32 %v1977, %v332
      %1994 = vst.msk [vmem:[%s289] sm:$0xff] %vm1149, %v1978
      %1995 = vst.msk [vmem:[%s289 + $0x8] sm:$0xff] %vm1149, %v1979
      %1996 = vst.msk [vmem:[%s289 + $0x10] sm:$0xff] %vm1149, %v1980
      %1997 = vst.msk [vmem:[%s289 + $0x18] sm:$0xff] %vm1149, %v1981
      %1998 = vst.msk [vmem:[%s289 + $0x20] sm:$0xff] %vm1149, %v1982
      %1999 = vst.msk [vmem:[%s289 + $0x28] sm:$0xff] %vm1149, %v1983
      %2000 = vst.msk [vmem:[%s289 + $0x30] sm:$0xff] %vm1149, %v1984
      %2001 = vst.msk [vmem:[%s289 + $0x38] sm:$0xff] %vm1149, %v1985
      %2002 = vst.msk [vmem:[%s289 + $0x40] sm:$0xff] %vm1149, %v1986
      %2003 = vst.msk [vmem:[%s289 + $0x48] sm:$0xff] %vm1149, %v1987
      %2004 = vst.msk [vmem:[%s289 + $0x50] sm:$0xff] %vm1149, %v1988
      %2005 = vst.msk [vmem:[%s289 + $0x58] sm:$0xff] %vm1149, %v1989
      %2006 = vst.msk [vmem:[%s289 + $0x60] sm:$0xff] %vm1149, %v1990
      %2007 = vst.msk [vmem:[%s289 + $0x68] sm:$0xff] %vm1149, %v1991
      %2008 = vst.msk [vmem:[%s289 + $0x70] sm:$0xff] %vm1149, %v1992
      %2009 = vst.msk [vmem:[%s289 + $0x78] sm:$0xff] %vm1149, %v1993
      %s2010 = smul.u32 8, %s22
      %p2011 = scmp.lt.s32.totalorder %s21, 1
      %s2012 = scalar_select %p2011, %s21, 1
      %p2013 = scmp.lt.s32.totalorder %s2010, 15
      %s2014 = scalar_select %p2013, %s2010, 15
      %s2015 = smul.addr %s2014, 2
      %s2016 = smul.addr %s2012, 32
      %s2017 = sadd.s32 %s2015, %s2016
      %s2018 = smul.addr %s2017, 8
      %s2019 = scalar_lea.vmem %s6, %s2018
      // Predicated region
      $region45: #{tpu_custom_call.1} parent=43 // pred_check
        %p2020 = pneg %p184
      $region46: #{tpu_custom_call.1} parent=43 // pred_check_branch
        %2022 = sbr.rel (%p2020) target = $region48
      $region47: #{tpu_custom_call.1} parent=43 // pred_region
        %s2023 = smul.u32 8, %s22
      $region48: #{tpu_custom_call.1} parent=43 // pred_fallthru
        _
    $region44: #{tpu_custom_call.1} parent=5 // pred_fallthru
      _
    %p2024 = scmp.le.s32.totalorder 2, %s12
    // Predicated region
    $region49: #{tpu_custom_call.1} parent=5 // pred_check
      %p2025 = pneg %p2024
    $region50: #{tpu_custom_call.1} parent=5 // pred_check_branch
      %2027 = sbr.rel (%p2025) target = $region52
    $region51: #{tpu_custom_call.1} parent=5 // pred_region
      %s2028 = ssub.s32 %s12, 2
      // Predicated region
      $region53: #{tpu_custom_call.1} parent=51 // pred_check
        %p2029 = pneg %p190
      $region54: #{tpu_custom_call.1} parent=51 // pred_check_branch
        %2031 = sbr.rel (%p2029) target = $region56
      $region55: #{tpu_custom_call.1} parent=51 // pred_region
        %s2032 = smul.u32 8, %s24
        %p2033 = scmp.lt.s32.totalorder %s23, 1
        %s2034 = scalar_select %p2033, %s23, 1
        %p2035 = scmp.lt.s32.totalorder %s2032, 15
        %s2036 = scalar_select %p2035, %s2032, 15
        %s2037 = smul.addr %s2036, 2
        %s2038 = smul.addr %s2034, 32
        %s2039 = sadd.s32 %s2037, %s2038
        %s2040 = smul.addr %s2039, 8
        %s2041 = scalar_lea.vmem %s6, %s2040
      $region56: #{tpu_custom_call.1} parent=51 // pred_fallthru
        _
    $region52: #{tpu_custom_call.1} parent=5 // pred_fallthru
      _
  $region6: #{tpu_custom_call.1} parent=0 // loop_footer
    %s16 = sadd.s32 1, %s12
  $region7: #{tpu_custom_call.1} parent=0 // loop_footer_branch
    %11 = sbr.rel target = $region3
  $region8: #{tpu_custom_call.1} parent=0 // loop_exit
    _

</llo_original>
